<compile_context>
chip_gen: v7x
topology: tpu7x:2x2x1
jax: 0.10.0
libtpu: 0.0.40
codegen_flags: <defaults>
</compile_context>

<pallas_src>
import jax
import jax.numpy as jnp
from jax.experimental import pallas as pl
from jax.experimental.pallas import tpu as pltpu

EPS = 1e-5


def _fused_kernel(x_ref, w_ref, gamma_ref, beta_ref, o_ref):
    # Channel-major layout:
    #   x_ref:     (Cin,  P)   f32    (P = N*H*W; free reshape of NCHW at N=1)
    #   w_ref:     (Cout, Cin) f32    (1x1 conv weight, squeezed)
    #   gamma_ref: (Cout, 1)   f32
    #   beta_ref:  (Cout, 1)   f32
    #   o_ref:     (Cout, P)   f32
    p = x_ref.shape[1]
    inv_p = 1.0 / p  # compile-time constant

    # ReLU (VPU)
    x = jnp.maximum(x_ref[...], 0.0)

    # 1x1 conv == (Cout, Cin) @ (Cin, P) matmul on the MXU, f32 accumulation.
    y = jnp.dot(w_ref[...], x, preferred_element_type=jnp.float32)  # (Cout, P)

    # Training-mode BatchNorm2d: per-channel batch statistics over the P lanes,
    # one-pass sum / sum-of-squares, folded into a scale/shift FMA epilogue.
    s = jnp.sum(y, axis=1, keepdims=True)        # (Cout, 1)  cross-lane reduce (XLU)
    ss = jnp.sum(y * y, axis=1, keepdims=True)   # (Cout, 1)
    mean = s * inv_p
    var = ss * inv_p - mean * mean               # biased variance
    scale = gamma_ref[...] * jax.lax.rsqrt(var + EPS)   # (Cout, 1)
    shift = beta_ref[...] - mean * scale                # (Cout, 1)

    o_ref[...] = y * scale + shift               # single mul+add per element


def relu_conv1x1_bn(x_nchw, conv_w, gamma, beta):
    """x_nchw: (N, C_in, H, W); conv_w: (C_out, C_in, 1, 1); gamma/beta: (C_out,)."""
    N, Cin, H, W = x_nchw.shape
    Cout = conv_w.shape[0]
    P = N * H * W

    x_nchw = x_nchw.astype(jnp.float32)
    if N == 1:
        # NCHW with N=1 is already channel-major: free reshape, no transpose.
        x2d = x_nchw.reshape(Cin, P)
    else:
        # General-N fallback (single transpose to channel-major).
        x2d = jnp.transpose(x_nchw, (1, 0, 2, 3)).reshape(Cin, P)

    w2d = conv_w.reshape(Cout, Cin).astype(jnp.float32)   # free reshape of (Cout,Cin,1,1)
    g2d = gamma.reshape(Cout, 1).astype(jnp.float32)
    b2d = beta.reshape(Cout, 1).astype(jnp.float32)

    out2d = pl.pallas_call(
        _fused_kernel,
        out_shape=jax.ShapeDtypeStruct((Cout, P), jnp.float32),
        in_specs=[
            pl.BlockSpec(memory_space=pltpu.MemorySpace.VMEM),
            pl.BlockSpec(memory_space=pltpu.MemorySpace.VMEM),
            pl.BlockSpec(memory_space=pltpu.MemorySpace.VMEM),
            pl.BlockSpec(memory_space=pltpu.MemorySpace.VMEM),
        ],
        out_specs=pl.BlockSpec(memory_space=pltpu.MemorySpace.VMEM),
    )(x2d, w2d, g2d, b2d)

    if N == 1:
        return out2d.reshape(1, Cout, H, W)        # free reshape back to NCHW
    return jnp.transpose(out2d.reshape(Cout, N, H, W), (1, 0, 2, 3))


def _reference(x_nchw, conv_w, gamma, beta):
    # Pure-JAX reference (two-pass variance) for sanity checking.
    N, Cin, H, W = x_nchw.shape
    Cout = conv_w.shape[0]
    x = jnp.maximum(x_nchw.astype(jnp.float32), 0.0)
    w = conv_w.reshape(Cout, Cin).astype(jnp.float32)
    y = jnp.einsum("oc,nchw->nohw", w, x)
    mean = jnp.mean(y, axis=(0, 2, 3), keepdims=True)
    var = jnp.mean((y - mean) ** 2, axis=(0, 2, 3), keepdims=True)
    return (y - mean) / jnp.sqrt(var + EPS) * gamma.reshape(1, Cout, 1, 1) + beta.reshape(
        1, Cout, 1, 1
    )


if __name__ == "__main__":
    key = jax.random.PRNGKey(0)
    kx, kw, kg, kb = jax.random.split(key, 4)

    N, C, H, W = 1, 400, 7, 7  # shapes implied by the module's forward

    x = jax.random.normal(kx, (N, C, H, W), dtype=jnp.float32)
    conv_w = jax.random.normal(kw, (C, C, 1, 1), dtype=jnp.float32) * (1.0 / jnp.sqrt(C))
    gamma = 1.0 + 0.1 * jax.random.normal(kg, (C,), dtype=jnp.float32)
    beta = 0.1 * jax.random.normal(kb, (C,), dtype=jnp.float32)

    out = jax.block_until_ready(relu_conv1x1_bn(x, conv_w, gamma, beta))

    ref = _reference(x, conv_w, gamma, beta)
    assert out.shape == (N, C, H, W)
    assert jnp.allclose(out, ref, atol=1e-3, rtol=1e-3), "mismatch vs reference"

    print("KERNEL_OK")
</pallas_src>

<mosaic_0001>
module attributes {stable_mosaic.version = 11 : i64} {
  func.func @_fused_kernel(%arg0: memref<400x49xf32, #tpu.memory_space<vmem>>, %arg1: memref<400x400xf32, #tpu.memory_space<vmem>>, %arg2: memref<400x1xf32, #tpu.memory_space<vmem>>, %arg3: memref<400x1xf32, #tpu.memory_space<vmem>>, %arg4: memref<400x49xf32, #tpu.memory_space<vmem>>) attributes {dimension_semantics = [], scalar_prefetch = 0 : i64, scratch_operands = 0 : i64, tpu.core_type = #tpu.core_type<tc>} {
    %c0 = arith.constant 0 : index
    %c0_0 = arith.constant 0 : index
    %0 = vector.load %arg0[%c0, %c0_0] : memref<400x49xf32, #tpu.memory_space<vmem>>, vector<400x49xf32>
    %cst = arith.constant 0.000000e+00 : f32
    %1 = vector.broadcast %cst : f32 to vector<400x49xf32>
    %2 = arith.maximumf %0, %1 : vector<400x49xf32>
    %c0_1 = arith.constant 0 : index
    %c0_2 = arith.constant 0 : index
    %3 = vector.load %arg1[%c0_1, %c0_2] : memref<400x400xf32, #tpu.memory_space<vmem>>, vector<400x400xf32>
    %cst_3 = arith.constant dense<0.000000e+00> : vector<400x49xf32>
    %4 = tpu.matmul %3, %2, %cst_3 {dimension_numbers = #tpu.dot_dimension_numbers<[1], [0], [0], [1], [0, 0, 1, 1], [], []>} : vector<400x400xf32>, vector<400x49xf32>, vector<400x49xf32> -> vector<400x49xf32>
    %cst_4 = arith.constant dense<0.000000e+00> : vector<400xf32>
    %5 = vector.multi_reduction <add>, %4, %cst_4 [1] : vector<400x49xf32> to vector<400xf32>
    %6 = vector.shape_cast %5 : vector<400xf32> to vector<400x1xf32>
    %7 = arith.mulf %4, %4 : vector<400x49xf32>
    %cst_5 = arith.constant dense<0.000000e+00> : vector<400xf32>
    %8 = vector.multi_reduction <add>, %7, %cst_5 [1] : vector<400x49xf32> to vector<400xf32>
    %9 = vector.shape_cast %8 : vector<400xf32> to vector<400x1xf32>
    %cst_6 = arith.constant 0.0204081628 : f32
    %10 = vector.broadcast %cst_6 : f32 to vector<400x1xf32>
    %11 = arith.mulf %6, %10 : vector<400x1xf32>
    %cst_7 = arith.constant 0.0204081628 : f32
    %12 = vector.broadcast %cst_7 : f32 to vector<400x1xf32>
    %13 = arith.mulf %9, %12 : vector<400x1xf32>
    %14 = arith.mulf %11, %11 : vector<400x1xf32>
    %15 = arith.subf %13, %14 : vector<400x1xf32>
    %c0_8 = arith.constant 0 : index
    %c0_9 = arith.constant 0 : index
    %16 = vector.load %arg2[%c0_8, %c0_9] : memref<400x1xf32, #tpu.memory_space<vmem>>, vector<400x1xf32>
    %cst_10 = arith.constant 9.99999974E-6 : f32
    %17 = vector.broadcast %cst_10 : f32 to vector<400x1xf32>
    %18 = arith.addf %15, %17 : vector<400x1xf32>
    %19 = math.rsqrt %18 : vector<400x1xf32>
    %20 = arith.mulf %16, %19 : vector<400x1xf32>
    %c0_11 = arith.constant 0 : index
    %c0_12 = arith.constant 0 : index
    %21 = vector.load %arg3[%c0_11, %c0_12] : memref<400x1xf32, #tpu.memory_space<vmem>>, vector<400x1xf32>
    %22 = arith.mulf %11, %20 : vector<400x1xf32>
    %23 = arith.subf %21, %22 : vector<400x1xf32>
    %24 = vector.broadcast %20 : vector<400x1xf32> to vector<400x49xf32>
    %25 = arith.mulf %4, %24 : vector<400x49xf32>
    %26 = vector.broadcast %23 : vector<400x1xf32> to vector<400x49xf32>
    %27 = arith.addf %25, %26 : vector<400x49xf32>
    %c0_13 = arith.constant 0 : index
    %c0_14 = arith.constant 0 : index
    %28 = vector.load %arg4[%c0_13, %c0_14] : memref<400x49xf32, #tpu.memory_space<vmem>>, vector<400x49xf32>
    tpu.vector_store %arg4[%c0_13, %c0_14], %27 {strides = array<i32>} : memref<400x49xf32, #tpu.memory_space<vmem>>, vector<400x49xf32>,
    return
  }
}

</mosaic_0001>

<llo_original>
// kernel: tpu_custom_call.1
$region0: #{tpu_custom_call.1}
  #allocation0 [shape = 'u32[]', space=smem, size = 0x4, offset = 0x4, fixed_abs, tag = 'smem constant byte address 0x4 - core index']
  #allocation1 [shape = 'u32[144,128]{1,0:T(1,128)}', space=vmem, size = 0x12000, scoped, tag = 'internal scratch']
  %s0 = inlined_call_operand.vmem [shape: f32[400,49], index: 0, kind: input, shape index: {}]
  %s1 = inlined_call_operand.hbm [shape: f32[400,400], index: 1, kind: input, shape index: {}]
  %s2 = inlined_call_operand.vmem [shape: f32[400,1], index: 2, kind: input, shape index: {}]
  %s3 = inlined_call_operand.vmem [shape: f32[400,1], index: 3, kind: input, shape index: {}]
  %s4 = inlined_call_operand.vmem [shape: f32[400,49], index: 4, kind: output, shape index: {}]
  %s5 = sld [smem:[#allocation0]]
  $region30: #{tpu_custom_call.1} parent=0
    _
  %s7 = ssub.s32 1, %s5
  %s8 = scalar_select 0, %s7, %s5
  $region1: #{tpu_custom_call.1} parent=0
    #allocation2 [shape = 'u8[819200]{0}', space=vmem, size = 0xc8000, scoped, tag = 'input window, operand 1, single buffered']
    #allocation3 [shape = 's32[1]{0}', space=sflag, size = 0x4, scoped, tag = 'scoped memory for tpu_custom_call.1']
    %9 = vsyncpa [#allocation3], 0
    // Predicated region
    $region2: #{tpu_custom_call.1} parent=1 // pred_check
      _
    $region3: #{tpu_custom_call.1} parent=1 // pred_check_branch
      %11 = sbr.rel (0) target = $region5
    $region4: #{tpu_custom_call.1} parent=1 // pred_region
      _
    $region5: #{tpu_custom_call.1} parent=1 // pred_fallthru
      _
    // Predicated region
    $region6: #{tpu_custom_call.1} parent=1 // pred_check
      _
    $region7: #{tpu_custom_call.1} parent=1 // pred_check_branch
      %13 = sbr.rel (0) target = $region9
    $region8: #{tpu_custom_call.1} parent=1 // pred_region
      %s15 = ssub.s32 25600, 25600
      %16 = vsyncadd [#allocation3], %s15
      %s17 = sshll.u32 [#allocation2], 4
      %s18 = int_to_ptr.vmem [resolvable:$true] %s17
      %23 = dma.hbm_to_vmem [thread:$0]  %s1, 25600, %s18, [#allocation3], 512, 512, 32
    $region9: #{tpu_custom_call.1} parent=1 // pred_fallthru
      _
    // Predicated region
    $region10: #{tpu_custom_call.1} parent=1 // pred_check
      _
    $region11: #{tpu_custom_call.1} parent=1 // pred_check_branch
      %25 = sbr.rel (0) target = $region13
    $region12: #{tpu_custom_call.1} parent=1 // pred_region
      _
    $region13: #{tpu_custom_call.1} parent=1 // pred_fallthru
      _
    // Predicated region
    $region14: #{tpu_custom_call.1} parent=1 // pred_check
      _
    $region15: #{tpu_custom_call.1} parent=1 // pred_check_branch
      %27 = sbr.rel (0) target = $region17
    $region16: #{tpu_custom_call.1} parent=1 // pred_region
      _
    $region17: #{tpu_custom_call.1} parent=1 // pred_fallthru
      _
    // Predicated region
    $region18: #{tpu_custom_call.1} parent=1 // pred_check
      _
    $region19: #{tpu_custom_call.1} parent=1 // pred_check_branch
      %29 = sbr.rel (0) target = $region21
    $region20: #{tpu_custom_call.1} parent=1 // pred_region
      %30 = dma.done [#allocation3], 25600
    $region21: #{tpu_custom_call.1} parent=1 // pred_fallthru
      _
    %v31 = vld [vmem:[%s0] sm:$0xff]
    %v32 = vld [vmem:[%s0 + $0x8] sm:$0xff]
    %v33 = vld [vmem:[%s0 + $0x10] sm:$0xff]
    %v34 = vld [vmem:[%s0 + $0x18] sm:$0xff]
    %v35 = vld [vmem:[%s0 + $0x20] sm:$0xff]
    %v36 = vld [vmem:[%s0 + $0x28] sm:$0xff]
    %v37 = vld [vmem:[%s0 + $0x30] sm:$0xff]
    %v38 = vld [vmem:[%s0 + $0x38] sm:$0xff]
    %v39 = vld [vmem:[%s0 + $0x40] sm:$0xff]
    %v40 = vld [vmem:[%s0 + $0x48] sm:$0xff]
    %v41 = vld [vmem:[%s0 + $0x50] sm:$0xff]
    %v42 = vld [vmem:[%s0 + $0x58] sm:$0xff]
    %v43 = vld [vmem:[%s0 + $0x60] sm:$0xff]
    %v44 = vld [vmem:[%s0 + $0x68] sm:$0xff]
    %v45 = vld [vmem:[%s0 + $0x70] sm:$0xff]
    %v46 = vld [vmem:[%s0 + $0x78] sm:$0xff]
    %v47 = vld [vmem:[%s0 + $0x80] sm:$0xff]
    %v48 = vld [vmem:[%s0 + $0x88] sm:$0xff]
    %v49 = vld [vmem:[%s0 + $0x90] sm:$0xff]
    %v50 = vld [vmem:[%s0 + $0x98] sm:$0xff]
    %v51 = vld [vmem:[%s0 + $0xa0] sm:$0xff]
    %v52 = vld [vmem:[%s0 + $0xa8] sm:$0xff]
    %v53 = vld [vmem:[%s0 + $0xb0] sm:$0xff]
    %v54 = vld [vmem:[%s0 + $0xb8] sm:$0xff]
    %v55 = vld [vmem:[%s0 + $0xc0] sm:$0xff]
    %v56 = vld [vmem:[%s0 + $0xc8] sm:$0xff]
    %v57 = vld [vmem:[%s0 + $0xd0] sm:$0xff]
    %v58 = vld [vmem:[%s0 + $0xd8] sm:$0xff]
    %v59 = vld [vmem:[%s0 + $0xe0] sm:$0xff]
    %v60 = vld [vmem:[%s0 + $0xe8] sm:$0xff]
    %v61 = vld [vmem:[%s0 + $0xf0] sm:$0xff]
    %v62 = vld [vmem:[%s0 + $0xf8] sm:$0xff]
    %v63 = vld [vmem:[%s0 + $0x100] sm:$0xff]
    %v64 = vld [vmem:[%s0 + $0x108] sm:$0xff]
    %v65 = vld [vmem:[%s0 + $0x110] sm:$0xff]
    %v66 = vld [vmem:[%s0 + $0x118] sm:$0xff]
    %v67 = vld [vmem:[%s0 + $0x120] sm:$0xff]
    %v68 = vld [vmem:[%s0 + $0x128] sm:$0xff]
    %v69 = vld [vmem:[%s0 + $0x130] sm:$0xff]
    %v70 = vld [vmem:[%s0 + $0x138] sm:$0xff]
    %v71 = vld [vmem:[%s0 + $0x140] sm:$0xff]
    %v72 = vld [vmem:[%s0 + $0x148] sm:$0xff]
    %v73 = vld [vmem:[%s0 + $0x150] sm:$0xff]
    %v74 = vld [vmem:[%s0 + $0x158] sm:$0xff]
    %v75 = vld [vmem:[%s0 + $0x160] sm:$0xff]
    %v76 = vld [vmem:[%s0 + $0x168] sm:$0xff]
    %v77 = vld [vmem:[%s0 + $0x170] sm:$0xff]
    %v78 = vld [vmem:[%s0 + $0x178] sm:$0xff]
    %v79 = vld [vmem:[%s0 + $0x180] sm:$0xff]
    %v80 = vld [vmem:[%s0 + $0x188] sm:$0xff]
    %v81 = vmax.f32 %v31, 0.0
    %v82 = vmax.f32 %v32, 0.0
    %v83 = vmax.f32 %v33, 0.0
    %v84 = vmax.f32 %v34, 0.0
    %v85 = vmax.f32 %v35, 0.0
    %v86 = vmax.f32 %v36, 0.0
    %v87 = vmax.f32 %v37, 0.0
    %v88 = vmax.f32 %v38, 0.0
    %v89 = vmax.f32 %v39, 0.0
    %v90 = vmax.f32 %v40, 0.0
    %v91 = vmax.f32 %v41, 0.0
    %v92 = vmax.f32 %v42, 0.0
    %v93 = vmax.f32 %v43, 0.0
    %v94 = vmax.f32 %v44, 0.0
    %v95 = vmax.f32 %v45, 0.0
    %v96 = vmax.f32 %v46, 0.0
    %v97 = vmax.f32 %v47, 0.0
    %v98 = vmax.f32 %v48, 0.0
    %v99 = vmax.f32 %v49, 0.0
    %v100 = vmax.f32 %v50, 0.0
    %v101 = vmax.f32 %v51, 0.0
    %v102 = vmax.f32 %v52, 0.0
    %v103 = vmax.f32 %v53, 0.0
    %v104 = vmax.f32 %v54, 0.0
    %v105 = vmax.f32 %v55, 0.0
    %v106 = vmax.f32 %v56, 0.0
    %v107 = vmax.f32 %v57, 0.0
    %v108 = vmax.f32 %v58, 0.0
    %v109 = vmax.f32 %v59, 0.0
    %v110 = vmax.f32 %v60, 0.0
    %v111 = vmax.f32 %v61, 0.0
    %v112 = vmax.f32 %v62, 0.0
    %v113 = vmax.f32 %v63, 0.0
    %v114 = vmax.f32 %v64, 0.0
    %v115 = vmax.f32 %v65, 0.0
    %v116 = vmax.f32 %v66, 0.0
    %v117 = vmax.f32 %v67, 0.0
    %v118 = vmax.f32 %v68, 0.0
    %v119 = vmax.f32 %v69, 0.0
    %v120 = vmax.f32 %v70, 0.0
    %v121 = vmax.f32 %v71, 0.0
    %v122 = vmax.f32 %v72, 0.0
    %v123 = vmax.f32 %v73, 0.0
    %v124 = vmax.f32 %v74, 0.0
    %v125 = vmax.f32 %v75, 0.0
    %v126 = vmax.f32 %v76, 0.0
    %v127 = vmax.f32 %v77, 0.0
    %v128 = vmax.f32 %v78, 0.0
    %v129 = vmax.f32 %v79, 0.0
    %v130 = vmax.f32 %v80, 0.0
    %v131 = vld [vmem:[#allocation2] sm:$0xff]
    %v132 = vld [vmem:[#allocation2 + $0x8] sm:$0xff]
    %v133 = vld [vmem:[#allocation2 + $0x10] sm:$0xff]
    %v134 = vld [vmem:[#allocation2 + $0x18] sm:$0xff]
    %v135 = vld [vmem:[#allocation2 + $0x20] sm:$0xff]
    %v136 = vld [vmem:[#allocation2 + $0x28] sm:$0xff]
    %v137 = vld [vmem:[#allocation2 + $0x30] sm:$0xff]
    %v138 = vld [vmem:[#allocation2 + $0x38] sm:$0xff]
    %v139 = vld [vmem:[#allocation2 + $0x40] sm:$0xff]
    %v140 = vld [vmem:[#allocation2 + $0x48] sm:$0xff]
    %v141 = vld [vmem:[#allocation2 + $0x50] sm:$0xff]
    %v142 = vld [vmem:[#allocation2 + $0x58] sm:$0xff]
    %v143 = vld [vmem:[#allocation2 + $0x60] sm:$0xff]
    %v144 = vld [vmem:[#allocation2 + $0x68] sm:$0xff]
    %v145 = vld [vmem:[#allocation2 + $0x70] sm:$0xff]
    %v146 = vld [vmem:[#allocation2 + $0x78] sm:$0xff]
    %v147 = vld [vmem:[#allocation2 + $0x80] sm:$0xff]
    %v148 = vld [vmem:[#allocation2 + $0x88] sm:$0xff]
    %v149 = vld [vmem:[#allocation2 + $0x90] sm:$0xff]
    %v150 = vld [vmem:[#allocation2 + $0x98] sm:$0xff]
    %v151 = vld [vmem:[#allocation2 + $0xa0] sm:$0xff]
    %v152 = vld [vmem:[#allocation2 + $0xa8] sm:$0xff]
    %v153 = vld [vmem:[#allocation2 + $0xb0] sm:$0xff]
    %v154 = vld [vmem:[#allocation2 + $0xb8] sm:$0xff]
    %v155 = vld [vmem:[#allocation2 + $0xc0] sm:$0xff]
    %v156 = vld [vmem:[#allocation2 + $0xc8] sm:$0xff]
    %v157 = vld [vmem:[#allocation2 + $0xd0] sm:$0xff]
    %v158 = vld [vmem:[#allocation2 + $0xd8] sm:$0xff]
    %v159 = vld [vmem:[#allocation2 + $0xe0] sm:$0xff]
    %v160 = vld [vmem:[#allocation2 + $0xe8] sm:$0xff]
    %v161 = vld [vmem:[#allocation2 + $0xf0] sm:$0xff]
    %v162 = vld [vmem:[#allocation2 + $0xf8] sm:$0xff]
    %v163 = vld [vmem:[#allocation2 + $0x100] sm:$0xff]
    %v164 = vld [vmem:[#allocation2 + $0x108] sm:$0xff]
    %v165 = vld [vmem:[#allocation2 + $0x110] sm:$0xff]
    %v166 = vld [vmem:[#allocation2 + $0x118] sm:$0xff]
    %v167 = vld [vmem:[#allocation2 + $0x120] sm:$0xff]
    %v168 = vld [vmem:[#allocation2 + $0x128] sm:$0xff]
    %v169 = vld [vmem:[#allocation2 + $0x130] sm:$0xff]
    %v170 = vld [vmem:[#allocation2 + $0x138] sm:$0xff]
    %v171 = vld [vmem:[#allocation2 + $0x140] sm:$0xff]
    %v172 = vld [vmem:[#allocation2 + $0x148] sm:$0xff]
    %v173 = vld [vmem:[#allocation2 + $0x150] sm:$0xff]
    %v174 = vld [vmem:[#allocation2 + $0x158] sm:$0xff]
    %v175 = vld [vmem:[#allocation2 + $0x160] sm:$0xff]
    %v176 = vld [vmem:[#allocation2 + $0x168] sm:$0xff]
    %v177 = vld [vmem:[#allocation2 + $0x170] sm:$0xff]
    %v178 = vld [vmem:[#allocation2 + $0x178] sm:$0xff]
    %v179 = vld [vmem:[#allocation2 + $0x180] sm:$0xff]
    %v180 = vld [vmem:[#allocation2 + $0x188] sm:$0xff]
    %v181 = vld [vmem:[#allocation2 + $0x190] sm:$0xff]
    %v182 = vld [vmem:[#allocation2 + $0x198] sm:$0xff]
    %v183 = vld [vmem:[#allocation2 + $0x1a0] sm:$0xff]
    %v184 = vld [vmem:[#allocation2 + $0x1a8] sm:$0xff]
    %v185 = vld [vmem:[#allocation2 + $0x1b0] sm:$0xff]
    %v186 = vld [vmem:[#allocation2 + $0x1b8] sm:$0xff]
    %v187 = vld [vmem:[#allocation2 + $0x1c0] sm:$0xff]
    %v188 = vld [vmem:[#allocation2 + $0x1c8] sm:$0xff]
    %v189 = vld [vmem:[#allocation2 + $0x1d0] sm:$0xff]
    %v190 = vld [vmem:[#allocation2 + $0x1d8] sm:$0xff]
    %v191 = vld [vmem:[#allocation2 + $0x1e0] sm:$0xff]
    %v192 = vld [vmem:[#allocation2 + $0x1e8] sm:$0xff]
    %v193 = vld [vmem:[#allocation2 + $0x1f0] sm:$0xff]
    %v194 = vld [vmem:[#allocation2 + $0x1f8] sm:$0xff]
    %v195 = vld [vmem:[#allocation2 + $0x200] sm:$0xff]
    %v196 = vld [vmem:[#allocation2 + $0x208] sm:$0xff]
    %v197 = vld [vmem:[#allocation2 + $0x210] sm:$0xff]
    %v198 = vld [vmem:[#allocation2 + $0x218] sm:$0xff]
    %v199 = vld [vmem:[#allocation2 + $0x220] sm:$0xff]
    %v200 = vld [vmem:[#allocation2 + $0x228] sm:$0xff]
    %v201 = vld [vmem:[#allocation2 + $0x230] sm:$0xff]
    %v202 = vld [vmem:[#allocation2 + $0x238] sm:$0xff]
    %v203 = vld [vmem:[#allocation2 + $0x240] sm:$0xff]
    %v204 = vld [vmem:[#allocation2 + $0x248] sm:$0xff]
    %v205 = vld [vmem:[#allocation2 + $0x250] sm:$0xff]
    %v206 = vld [vmem:[#allocation2 + $0x258] sm:$0xff]
    %v207 = vld [vmem:[#allocation2 + $0x260] sm:$0xff]
    %v208 = vld [vmem:[#allocation2 + $0x268] sm:$0xff]
    %v209 = vld [vmem:[#allocation2 + $0x270] sm:$0xff]
    %v210 = vld [vmem:[#allocation2 + $0x278] sm:$0xff]
    %v211 = vld [vmem:[#allocation2 + $0x280] sm:$0xff]
    %v212 = vld [vmem:[#allocation2 + $0x288] sm:$0xff]
    %v213 = vld [vmem:[#allocation2 + $0x290] sm:$0xff]
    %v214 = vld [vmem:[#allocation2 + $0x298] sm:$0xff]
    %v215 = vld [vmem:[#allocation2 + $0x2a0] sm:$0xff]
    %v216 = vld [vmem:[#allocation2 + $0x2a8] sm:$0xff]
    %v217 = vld [vmem:[#allocation2 + $0x2b0] sm:$0xff]
    %v218 = vld [vmem:[#allocation2 + $0x2b8] sm:$0xff]
    %v219 = vld [vmem:[#allocation2 + $0x2c0] sm:$0xff]
    %v220 = vld [vmem:[#allocation2 + $0x2c8] sm:$0xff]
    %v221 = vld [vmem:[#allocation2 + $0x2d0] sm:$0xff]
    %v222 = vld [vmem:[#allocation2 + $0x2d8] sm:$0xff]
    %v223 = vld [vmem:[#allocation2 + $0x2e0] sm:$0xff]
    %v224 = vld [vmem:[#allocation2 + $0x2e8] sm:$0xff]
    %v225 = vld [vmem:[#allocation2 + $0x2f0] sm:$0xff]
    %v226 = vld [vmem:[#allocation2 + $0x2f8] sm:$0xff]
    %v227 = vld [vmem:[#allocation2 + $0x300] sm:$0xff]
    %v228 = vld [vmem:[#allocation2 + $0x308] sm:$0xff]
    %v229 = vld [vmem:[#allocation2 + $0x310] sm:$0xff]
    %v230 = vld [vmem:[#allocation2 + $0x318] sm:$0xff]
    %v231 = vld [vmem:[#allocation2 + $0x320] sm:$0xff]
    %v232 = vld [vmem:[#allocation2 + $0x328] sm:$0xff]
    %v233 = vld [vmem:[#allocation2 + $0x330] sm:$0xff]
    %v234 = vld [vmem:[#allocation2 + $0x338] sm:$0xff]
    %v235 = vld [vmem:[#allocation2 + $0x340] sm:$0xff]
    %v236 = vld [vmem:[#allocation2 + $0x348] sm:$0xff]
    %v237 = vld [vmem:[#allocation2 + $0x350] sm:$0xff]
    %v238 = vld [vmem:[#allocation2 + $0x358] sm:$0xff]
    %v239 = vld [vmem:[#allocation2 + $0x360] sm:$0xff]
    %v240 = vld [vmem:[#allocation2 + $0x368] sm:$0xff]
    %v241 = vld [vmem:[#allocation2 + $0x370] sm:$0xff]
    %v242 = vld [vmem:[#allocation2 + $0x378] sm:$0xff]
    %v243 = vld [vmem:[#allocation2 + $0x380] sm:$0xff]
    %v244 = vld [vmem:[#allocation2 + $0x388] sm:$0xff]
    %v245 = vld [vmem:[#allocation2 + $0x390] sm:$0xff]
    %v246 = vld [vmem:[#allocation2 + $0x398] sm:$0xff]
    %v247 = vld [vmem:[#allocation2 + $0x3a0] sm:$0xff]
    %v248 = vld [vmem:[#allocation2 + $0x3a8] sm:$0xff]
    %v249 = vld [vmem:[#allocation2 + $0x3b0] sm:$0xff]
    %v250 = vld [vmem:[#allocation2 + $0x3b8] sm:$0xff]
    %v251 = vld [vmem:[#allocation2 + $0x3c0] sm:$0xff]
    %v252 = vld [vmem:[#allocation2 + $0x3c8] sm:$0xff]
    %v253 = vld [vmem:[#allocation2 + $0x3d0] sm:$0xff]
    %v254 = vld [vmem:[#allocation2 + $0x3d8] sm:$0xff]
    %v255 = vld [vmem:[#allocation2 + $0x3e0] sm:$0xff]
    %v256 = vld [vmem:[#allocation2 + $0x3e8] sm:$0xff]
    %v257 = vld [vmem:[#allocation2 + $0x3f0] sm:$0xff]
    %v258 = vld [vmem:[#allocation2 + $0x3f8] sm:$0xff]
    %v259 = vld [vmem:[#allocation2 + $0x400] sm:$0xff]
    %v260 = vld [vmem:[#allocation2 + $0x408] sm:$0xff]
    %v261 = vld [vmem:[#allocation2 + $0x410] sm:$0xff]
    %v262 = vld [vmem:[#allocation2 + $0x418] sm:$0xff]
    %v263 = vld [vmem:[#allocation2 + $0x420] sm:$0xff]
    %v264 = vld [vmem:[#allocation2 + $0x428] sm:$0xff]
    %v265 = vld [vmem:[#allocation2 + $0x430] sm:$0xff]
    %v266 = vld [vmem:[#allocation2 + $0x438] sm:$0xff]
    %v267 = vld [vmem:[#allocation2 + $0x440] sm:$0xff]
    %v268 = vld [vmem:[#allocation2 + $0x448] sm:$0xff]
    %v269 = vld [vmem:[#allocation2 + $0x450] sm:$0xff]
    %v270 = vld [vmem:[#allocation2 + $0x458] sm:$0xff]
    %v271 = vld [vmem:[#allocation2 + $0x460] sm:$0xff]
    %v272 = vld [vmem:[#allocation2 + $0x468] sm:$0xff]
    %v273 = vld [vmem:[#allocation2 + $0x470] sm:$0xff]
    %v274 = vld [vmem:[#allocation2 + $0x478] sm:$0xff]
    %v275 = vld [vmem:[#allocation2 + $0x480] sm:$0xff]
    %v276 = vld [vmem:[#allocation2 + $0x488] sm:$0xff]
    %v277 = vld [vmem:[#allocation2 + $0x490] sm:$0xff]
    %v278 = vld [vmem:[#allocation2 + $0x498] sm:$0xff]
    %v279 = vld [vmem:[#allocation2 + $0x4a0] sm:$0xff]
    %v280 = vld [vmem:[#allocation2 + $0x4a8] sm:$0xff]
    %v281 = vld [vmem:[#allocation2 + $0x4b0] sm:$0xff]
    %v282 = vld [vmem:[#allocation2 + $0x4b8] sm:$0xff]
    %v283 = vld [vmem:[#allocation2 + $0x4c0] sm:$0xff]
    %v284 = vld [vmem:[#allocation2 + $0x4c8] sm:$0xff]
    %v285 = vld [vmem:[#allocation2 + $0x4d0] sm:$0xff]
    %v286 = vld [vmem:[#allocation2 + $0x4d8] sm:$0xff]
    %v287 = vld [vmem:[#allocation2 + $0x4e0] sm:$0xff]
    %v288 = vld [vmem:[#allocation2 + $0x4e8] sm:$0xff]
    %v289 = vld [vmem:[#allocation2 + $0x4f0] sm:$0xff]
    %v290 = vld [vmem:[#allocation2 + $0x4f8] sm:$0xff]
    %v291 = vld [vmem:[#allocation2 + $0x500] sm:$0xff]
    %v292 = vld [vmem:[#allocation2 + $0x508] sm:$0xff]
    %v293 = vld [vmem:[#allocation2 + $0x510] sm:$0xff]
    %v294 = vld [vmem:[#allocation2 + $0x518] sm:$0xff]
    %v295 = vld [vmem:[#allocation2 + $0x520] sm:$0xff]
    %v296 = vld [vmem:[#allocation2 + $0x528] sm:$0xff]
    %v297 = vld [vmem:[#allocation2 + $0x530] sm:$0xff]
    %v298 = vld [vmem:[#allocation2 + $0x538] sm:$0xff]
    %v299 = vld [vmem:[#allocation2 + $0x540] sm:$0xff]
    %v300 = vld [vmem:[#allocation2 + $0x548] sm:$0xff]
    %v301 = vld [vmem:[#allocation2 + $0x550] sm:$0xff]
    %v302 = vld [vmem:[#allocation2 + $0x558] sm:$0xff]
    %v303 = vld [vmem:[#allocation2 + $0x560] sm:$0xff]
    %v304 = vld [vmem:[#allocation2 + $0x568] sm:$0xff]
    %v305 = vld [vmem:[#allocation2 + $0x570] sm:$0xff]
    %v306 = vld [vmem:[#allocation2 + $0x578] sm:$0xff]
    %v307 = vld [vmem:[#allocation2 + $0x580] sm:$0xff]
    %v308 = vld [vmem:[#allocation2 + $0x588] sm:$0xff]
    %v309 = vld [vmem:[#allocation2 + $0x590] sm:$0xff]
    %v310 = vld [vmem:[#allocation2 + $0x598] sm:$0xff]
    %v311 = vld [vmem:[#allocation2 + $0x5a0] sm:$0xff]
    %v312 = vld [vmem:[#allocation2 + $0x5a8] sm:$0xff]
    %v313 = vld [vmem:[#allocation2 + $0x5b0] sm:$0xff]
    %v314 = vld [vmem:[#allocation2 + $0x5b8] sm:$0xff]
    %v315 = vld [vmem:[#allocation2 + $0x5c0] sm:$0xff]
    %v316 = vld [vmem:[#allocation2 + $0x5c8] sm:$0xff]
    %v317 = vld [vmem:[#allocation2 + $0x5d0] sm:$0xff]
    %v318 = vld [vmem:[#allocation2 + $0x5d8] sm:$0xff]
    %v319 = vld [vmem:[#allocation2 + $0x5e0] sm:$0xff]
    %v320 = vld [vmem:[#allocation2 + $0x5e8] sm:$0xff]
    %v321 = vld [vmem:[#allocation2 + $0x5f0] sm:$0xff]
    %v322 = vld [vmem:[#allocation2 + $0x5f8] sm:$0xff]
    %v323 = vld [vmem:[#allocation2 + $0x600] sm:$0xff]
    %v324 = vld [vmem:[#allocation2 + $0x608] sm:$0xff]
    %v325 = vld [vmem:[#allocation2 + $0x610] sm:$0xff]
    %v326 = vld [vmem:[#allocation2 + $0x618] sm:$0xff]
    %v327 = vld [vmem:[#allocation2 + $0x620] sm:$0xff]
    %v328 = vld [vmem:[#allocation2 + $0x628] sm:$0xff]
    %v329 = vld [vmem:[#allocation2 + $0x630] sm:$0xff]
    %v330 = vld [vmem:[#allocation2 + $0x638] sm:$0xff]
    %vm331 = vcmask 130048
    %v333 = vsel %vm331, %v134, 0
    %v336 = vsel %vm331, %v138, 0
    %v339 = vsel %vm331, %v142, 0
    %v342 = vsel %vm331, %v146, 0
    %v345 = vsel %vm331, %v150, 0
    %v348 = vsel %vm331, %v154, 0
    %v351 = vsel %vm331, %v158, 0
    %v354 = vsel %vm331, %v162, 0
    %v357 = vsel %vm331, %v166, 0
    %v360 = vsel %vm331, %v170, 0
    %v363 = vsel %vm331, %v174, 0
    %v366 = vsel %vm331, %v178, 0
    %v369 = vsel %vm331, %v182, 0
    %v372 = vsel %vm331, %v186, 0
    %v375 = vsel %vm331, %v190, 0
    %v378 = vsel %vm331, %v194, 0
    %v381 = vsel %vm331, %v198, 0
    %v384 = vsel %vm331, %v202, 0
    %v387 = vsel %vm331, %v206, 0
    %v390 = vsel %vm331, %v210, 0
    %v393 = vsel %vm331, %v214, 0
    %v396 = vsel %vm331, %v218, 0
    %v399 = vsel %vm331, %v222, 0
    %v402 = vsel %vm331, %v226, 0
    %v405 = vsel %vm331, %v230, 0
    %v408 = vsel %vm331, %v234, 0
    %v411 = vsel %vm331, %v238, 0
    %v414 = vsel %vm331, %v242, 0
    %v417 = vsel %vm331, %v246, 0
    %v420 = vsel %vm331, %v250, 0
    %v423 = vsel %vm331, %v254, 0
    %v426 = vsel %vm331, %v258, 0
    %v429 = vsel %vm331, %v262, 0
    %v432 = vsel %vm331, %v266, 0
    %v435 = vsel %vm331, %v270, 0
    %v438 = vsel %vm331, %v274, 0
    %v441 = vsel %vm331, %v278, 0
    %v444 = vsel %vm331, %v282, 0
    %v447 = vsel %vm331, %v286, 0
    %v450 = vsel %vm331, %v290, 0
    %v453 = vsel %vm331, %v294, 0
    %v456 = vsel %vm331, %v298, 0
    %v459 = vsel %vm331, %v302, 0
    %v462 = vsel %vm331, %v306, 0
    %v465 = vsel %vm331, %v310, 0
    %v468 = vsel %vm331, %v314, 0
    %v471 = vsel %vm331, %v318, 0
    %v474 = vsel %vm331, %v322, 0
    %v477 = vsel %vm331, %v326, 0
    %v480 = vsel %vm331, %v330, 0
    %482 = vmatprep.subr.mxu0 0.0
    %483 = vmatpush1.msra.mxu0 %v81
    %484 = vmatprep.subr.mxu0 0.0
    %485 = vmatpush1.msra.mxu0 %v82
    %486 = vmatprep.subr.mxu0 0.0
    %487 = vmatpush1.msra.mxu0 %v83
    %488 = vmatprep.subr.mxu0 0.0
    %489 = vmatpush1.msra.mxu0 %v84
    %490 = vmatprep.subr.mxu0 0.0
    %491 = vmatpush1.msra.mxu0 %v85
    %492 = vmatprep.subr.mxu0 0.0
    %493 = vmatpush1.msra.mxu0 %v86
    %494 = vmatprep.subr.mxu0 0.0
    %495 = vmatpush1.msra.mxu0 %v87
    %496 = vmatprep.subr.mxu0 0.0
    %497 = vmatpush1.msra.mxu0 %v88
    %498 = vmatprep.subr.mxu0 0.0
    %499 = vmatpush1.msra.mxu0 %v89
    %500 = vmatprep.subr.mxu0 0.0
    %501 = vmatpush1.msra.mxu0 %v90
    %502 = vmatprep.subr.mxu0 0.0
    %503 = vmatpush1.msra.mxu0 %v91
    %504 = vmatprep.subr.mxu0 0.0
    %505 = vmatpush1.msra.mxu0 %v92
    %506 = vmatprep.subr.mxu0 0.0
    %507 = vmatpush1.msra.mxu0 %v93
    %508 = vmatprep.subr.mxu0 0.0
    %509 = vmatpush1.msra.mxu0 %v94
    %510 = vmatprep.subr.mxu0 0.0
    %511 = vmatpush1.msra.mxu0 %v95
    %512 = vmatprep.subr.mxu0 0.0
    %513 = vmatpush1.msra.mxu0 %v96
    %514 = vmatprep.subr.mxu0 0.0
    %515 = vmatpush1.msra.mxu0 %v97
    %516 = vmatprep.subr.mxu0 0.0
    %517 = vmatpush1.msra.mxu0 %v98
    %518 = vmatprep.subr.mxu0 0.0
    %519 = vmatpush1.msra.mxu0 %v99
    %520 = vmatprep.subr.mxu0 0.0
    %521 = vmatpush1.msra.mxu0 %v100
    %522 = vmatprep.subr.mxu0 0.0
    %523 = vmatpush1.msra.mxu0 %v101
    %524 = vmatprep.subr.mxu0 0.0
    %525 = vmatpush1.msra.mxu0 %v102
    %526 = vmatprep.subr.mxu0 0.0
    %527 = vmatpush1.msra.mxu0 %v103
    %528 = vmatprep.subr.mxu0 0.0
    %529 = vmatpush1.msra.mxu0 %v104
    %530 = vmatprep.subr.mxu0 0.0
    %531 = vmatpush1.msra.mxu0 %v105
    %532 = vmatprep.subr.mxu0 0.0
    %533 = vmatpush1.msra.mxu0 %v106
    %534 = vmatprep.subr.mxu0 0.0
    %535 = vmatpush1.msra.mxu0 %v107
    %536 = vmatprep.subr.mxu0 0.0
    %537 = vmatpush1.msra.mxu0 %v108
    %538 = vmatprep.subr.mxu0 0.0
    %539 = vmatpush1.msra.mxu0 %v109
    %540 = vmatprep.subr.mxu0 0.0
    %541 = vmatpush1.msra.mxu0 %v110
    %542 = vmatprep.subr.mxu0 0.0
    %543 = vmatpush1.msra.mxu0 %v111
    %544 = vmatprep.subr.mxu0 0.0
    %545 = vmatpush1.msra.mxu0 %v112
    %546 = vmatprep.mubr.f32.mxu0 %v132
    %547 = vmatmul.mubr.f32.gmra.mrb[0].mxu0 %v131
    %v548 = vpop.f32.mrb[0].mxu0
    %v549 = vadd.f32 0.0, %v548
    %v550 = vpop.f32.mrb[0].mxu0
    %551 = vmatprep.mubr.f32.mxu0 %v136
    %552 = vmatmul.mubr.f32.gmra.mrb[0].mxu0 %v135
    %v553 = vpop.f32.mrb[0].mxu0
    %v554 = vadd.f32 0.0, %v553
    %v555 = vpop.f32.mrb[0].mxu0
    %556 = vmatprep.mubr.f32.mxu0 %v140
    %557 = vmatmul.mubr.f32.gmra.mrb[0].mxu0 %v139
    %v558 = vpop.f32.mrb[0].mxu0
    %v559 = vadd.f32 0.0, %v558
    %v560 = vpop.f32.mrb[0].mxu0
    %561 = vmatprep.mubr.f32.mxu0 %v144
    %562 = vmatmul.mubr.f32.gmra.mrb[0].mxu0 %v143
    %v563 = vpop.f32.mrb[0].mxu0
    %v564 = vadd.f32 0.0, %v563
    %v565 = vpop.f32.mrb[0].mxu0
    %566 = vmatprep.mubr.f32.mxu0 %v148
    %567 = vmatmul.mubr.f32.gmra.mrb[0].mxu0 %v147
    %v568 = vpop.f32.mrb[0].mxu0
    %v569 = vadd.f32 0.0, %v568
    %v570 = vpop.f32.mrb[0].mxu0
    %571 = vmatprep.mubr.f32.mxu0 %v152
    %572 = vmatmul.mubr.f32.gmra.mrb[0].mxu0 %v151
    %v573 = vpop.f32.mrb[0].mxu0
    %v574 = vadd.f32 0.0, %v573
    %v575 = vpop.f32.mrb[0].mxu0
    %576 = vmatprep.mubr.f32.mxu0 %v156
    %577 = vmatmul.mubr.f32.gmra.mrb[0].mxu0 %v155
    %v578 = vpop.f32.mrb[0].mxu0
    %v579 = vadd.f32 0.0, %v578
    %v580 = vpop.f32.mrb[0].mxu0
    %581 = vmatprep.mubr.f32.mxu0 %v160
    %582 = vmatmul.mubr.f32.gmra.mrb[0].mxu0 %v159
    %v583 = vpop.f32.mrb[0].mxu0
    %v584 = vadd.f32 0.0, %v583
    %v585 = vpop.f32.mrb[0].mxu0
    %586 = vmatprep.mubr.f32.mxu0 %v164
    %587 = vmatmul.mubr.f32.gmra.mrb[0].mxu0 %v163
    %v588 = vpop.f32.mrb[0].mxu0
    %v589 = vadd.f32 0.0, %v588
    %v590 = vpop.f32.mrb[0].mxu0
    %591 = vmatprep.mubr.f32.mxu0 %v168
    %592 = vmatmul.mubr.f32.gmra.mrb[0].mxu0 %v167
    %v593 = vpop.f32.mrb[0].mxu0
    %v594 = vadd.f32 0.0, %v593
    %v595 = vpop.f32.mrb[0].mxu0
    %596 = vmatprep.mubr.f32.mxu0 %v172
    %597 = vmatmul.mubr.f32.gmra.mrb[0].mxu0 %v171
    %v598 = vpop.f32.mrb[0].mxu0
    %v599 = vadd.f32 0.0, %v598
    %v600 = vpop.f32.mrb[0].mxu0
    %601 = vmatprep.mubr.f32.mxu0 %v176
    %602 = vmatmul.mubr.f32.gmra.mrb[0].mxu0 %v175
    %v603 = vpop.f32.mrb[0].mxu0
    %v604 = vadd.f32 0.0, %v603
    %v605 = vpop.f32.mrb[0].mxu0
    %606 = vmatprep.mubr.f32.mxu0 %v180
    %607 = vmatmul.mubr.f32.gmra.mrb[0].mxu0 %v179
    %v608 = vpop.f32.mrb[0].mxu0
    %v609 = vadd.f32 0.0, %v608
    %v610 = vpop.f32.mrb[0].mxu0
    %611 = vmatprep.mubr.f32.mxu0 %v184
    %612 = vmatmul.mubr.f32.gmra.mrb[0].mxu0 %v183
    %v613 = vpop.f32.mrb[0].mxu0
    %v614 = vadd.f32 0.0, %v613
    %v615 = vpop.f32.mrb[0].mxu0
    %616 = vmatprep.mubr.f32.mxu0 %v188
    %617 = vmatmul.mubr.f32.gmra.mrb[0].mxu0 %v187
    %v618 = vpop.f32.mrb[0].mxu0
    %v619 = vadd.f32 0.0, %v618
    %v620 = vpop.f32.mrb[0].mxu0
    %621 = vmatprep.mubr.f32.mxu0 %v192
    %622 = vmatmul.mubr.f32.gmra.mrb[0].mxu0 %v191
    %v623 = vpop.f32.mrb[0].mxu0
    %v624 = vadd.f32 0.0, %v623
    %v625 = vpop.f32.mrb[0].mxu0
    %626 = vmatprep.mubr.f32.mxu0 %v196
    %627 = vmatmul.mubr.f32.gmra.mrb[0].mxu0 %v195
    %v628 = vpop.f32.mrb[0].mxu0
    %v629 = vadd.f32 0.0, %v628
    %v630 = vpop.f32.mrb[0].mxu0
    %631 = vmatprep.mubr.f32.mxu0 %v200
    %632 = vmatmul.mubr.f32.gmra.mrb[0].mxu0 %v199
    %v633 = vpop.f32.mrb[0].mxu0
    %v634 = vadd.f32 0.0, %v633
    %v635 = vpop.f32.mrb[0].mxu0
    %636 = vmatprep.mubr.f32.mxu0 %v204
    %637 = vmatmul.mubr.f32.gmra.mrb[0].mxu0 %v203
    %v638 = vpop.f32.mrb[0].mxu0
    %v639 = vadd.f32 0.0, %v638
    %v640 = vpop.f32.mrb[0].mxu0
    %641 = vmatprep.mubr.f32.mxu0 %v208
    %642 = vmatmul.mubr.f32.gmra.mrb[0].mxu0 %v207
    %v643 = vpop.f32.mrb[0].mxu0
    %v644 = vadd.f32 0.0, %v643
    %v645 = vpop.f32.mrb[0].mxu0
    %646 = vmatprep.mubr.f32.mxu0 %v212
    %647 = vmatmul.mubr.f32.gmra.mrb[0].mxu0 %v211
    %v648 = vpop.f32.mrb[0].mxu0
    %v649 = vadd.f32 0.0, %v648
    %v650 = vpop.f32.mrb[0].mxu0
    %651 = vmatprep.mubr.f32.mxu0 %v216
    %652 = vmatmul.mubr.f32.gmra.mrb[0].mxu0 %v215
    %v653 = vpop.f32.mrb[0].mxu0
    %v654 = vadd.f32 0.0, %v653
    %v655 = vpop.f32.mrb[0].mxu0
    %656 = vmatprep.mubr.f32.mxu0 %v220
    %657 = vmatmul.mubr.f32.gmra.mrb[0].mxu0 %v219
    %v658 = vpop.f32.mrb[0].mxu0
    %v659 = vadd.f32 0.0, %v658
    %v660 = vpop.f32.mrb[0].mxu0
    %661 = vmatprep.mubr.f32.mxu0 %v224
    %662 = vmatmul.mubr.f32.gmra.mrb[0].mxu0 %v223
    %v663 = vpop.f32.mrb[0].mxu0
    %v664 = vadd.f32 0.0, %v663
    %v665 = vpop.f32.mrb[0].mxu0
    %666 = vmatprep.mubr.f32.mxu0 %v228
    %667 = vmatmul.mubr.f32.gmra.mrb[0].mxu0 %v227
    %v668 = vpop.f32.mrb[0].mxu0
    %v669 = vadd.f32 0.0, %v668
    %v670 = vpop.f32.mrb[0].mxu0
    %671 = vmatprep.mubr.f32.mxu0 %v232
    %672 = vmatmul.mubr.f32.gmra.mrb[0].mxu0 %v231
    %v673 = vpop.f32.mrb[0].mxu0
    %v674 = vadd.f32 0.0, %v673
    %v675 = vpop.f32.mrb[0].mxu0
    %676 = vmatprep.mubr.f32.mxu0 %v236
    %677 = vmatmul.mubr.f32.gmra.mrb[0].mxu0 %v235
    %v678 = vpop.f32.mrb[0].mxu0
    %v679 = vadd.f32 0.0, %v678
    %v680 = vpop.f32.mrb[0].mxu0
    %681 = vmatprep.mubr.f32.mxu0 %v240
    %682 = vmatmul.mubr.f32.gmra.mrb[0].mxu0 %v239
    %v683 = vpop.f32.mrb[0].mxu0
    %v684 = vadd.f32 0.0, %v683
    %v685 = vpop.f32.mrb[0].mxu0
    %686 = vmatprep.mubr.f32.mxu0 %v244
    %687 = vmatmul.mubr.f32.gmra.mrb[0].mxu0 %v243
    %v688 = vpop.f32.mrb[0].mxu0
    %v689 = vadd.f32 0.0, %v688
    %v690 = vpop.f32.mrb[0].mxu0
    %691 = vmatprep.mubr.f32.mxu0 %v248
    %692 = vmatmul.mubr.f32.gmra.mrb[0].mxu0 %v247
    %v693 = vpop.f32.mrb[0].mxu0
    %v694 = vadd.f32 0.0, %v693
    %v695 = vpop.f32.mrb[0].mxu0
    %696 = vmatprep.mubr.f32.mxu0 %v252
    %697 = vmatmul.mubr.f32.gmra.mrb[0].mxu0 %v251
    %v698 = vpop.f32.mrb[0].mxu0
    %v699 = vadd.f32 0.0, %v698
    %v700 = vpop.f32.mrb[0].mxu0
    %701 = vmatprep.mubr.f32.mxu0 %v256
    %702 = vmatmul.mubr.f32.gmra.mrb[0].mxu0 %v255
    %v703 = vpop.f32.mrb[0].mxu0
    %v704 = vadd.f32 0.0, %v703
    %v705 = vpop.f32.mrb[0].mxu0
    %706 = vmatprep.mubr.f32.mxu0 %v260
    %707 = vmatmul.mubr.f32.gmra.mrb[0].mxu0 %v259
    %v708 = vpop.f32.mrb[0].mxu0
    %v709 = vadd.f32 0.0, %v708
    %v710 = vpop.f32.mrb[0].mxu0
    %711 = vmatprep.mubr.f32.mxu0 %v264
    %712 = vmatmul.mubr.f32.gmra.mrb[0].mxu0 %v263
    %v713 = vpop.f32.mrb[0].mxu0
    %v714 = vadd.f32 0.0, %v713
    %v715 = vpop.f32.mrb[0].mxu0
    %716 = vmatprep.mubr.f32.mxu0 %v268
    %717 = vmatmul.mubr.f32.gmra.mrb[0].mxu0 %v267
    %v718 = vpop.f32.mrb[0].mxu0
    %v719 = vadd.f32 0.0, %v718
    %v720 = vpop.f32.mrb[0].mxu0
    %721 = vmatprep.mubr.f32.mxu0 %v272
    %722 = vmatmul.mubr.f32.gmra.mrb[0].mxu0 %v271
    %v723 = vpop.f32.mrb[0].mxu0
    %v724 = vadd.f32 0.0, %v723
    %v725 = vpop.f32.mrb[0].mxu0
    %726 = vmatprep.mubr.f32.mxu0 %v276
    %727 = vmatmul.mubr.f32.gmra.mrb[0].mxu0 %v275
    %v728 = vpop.f32.mrb[0].mxu0
    %v729 = vadd.f32 0.0, %v728
    %v730 = vpop.f32.mrb[0].mxu0
    %731 = vmatprep.mubr.f32.mxu0 %v280
    %732 = vmatmul.mubr.f32.gmra.mrb[0].mxu0 %v279
    %v733 = vpop.f32.mrb[0].mxu0
    %v734 = vadd.f32 0.0, %v733
    %v735 = vpop.f32.mrb[0].mxu0
    %736 = vmatprep.mubr.f32.mxu0 %v284
    %737 = vmatmul.mubr.f32.gmra.mrb[0].mxu0 %v283
    %v738 = vpop.f32.mrb[0].mxu0
    %v739 = vadd.f32 0.0, %v738
    %v740 = vpop.f32.mrb[0].mxu0
    %741 = vmatprep.mubr.f32.mxu0 %v288
    %742 = vmatmul.mubr.f32.gmra.mrb[0].mxu0 %v287
    %v743 = vpop.f32.mrb[0].mxu0
    %v744 = vadd.f32 0.0, %v743
    %v745 = vpop.f32.mrb[0].mxu0
    %746 = vmatprep.mubr.f32.mxu0 %v292
    %747 = vmatmul.mubr.f32.gmra.mrb[0].mxu0 %v291
    %v748 = vpop.f32.mrb[0].mxu0
    %v749 = vadd.f32 0.0, %v748
    %v750 = vpop.f32.mrb[0].mxu0
    %751 = vmatprep.mubr.f32.mxu0 %v296
    %752 = vmatmul.mubr.f32.gmra.mrb[0].mxu0 %v295
    %v753 = vpop.f32.mrb[0].mxu0
    %v754 = vadd.f32 0.0, %v753
    %v755 = vpop.f32.mrb[0].mxu0
    %756 = vmatprep.mubr.f32.mxu0 %v300
    %757 = vmatmul.mubr.f32.gmra.mrb[0].mxu0 %v299
    %v758 = vpop.f32.mrb[0].mxu0
    %v759 = vadd.f32 0.0, %v758
    %v760 = vpop.f32.mrb[0].mxu0
    %761 = vmatprep.mubr.f32.mxu0 %v304
    %762 = vmatmul.mubr.f32.gmra.mrb[0].mxu0 %v303
    %v763 = vpop.f32.mrb[0].mxu0
    %v764 = vadd.f32 0.0, %v763
    %v765 = vpop.f32.mrb[0].mxu0
    %766 = vmatprep.mubr.f32.mxu0 %v308
    %767 = vmatmul.mubr.f32.gmra.mrb[0].mxu0 %v307
    %v768 = vpop.f32.mrb[0].mxu0
    %v769 = vadd.f32 0.0, %v768
    %v770 = vpop.f32.mrb[0].mxu0
    %771 = vmatprep.mubr.f32.mxu0 %v312
    %772 = vmatmul.mubr.f32.gmra.mrb[0].mxu0 %v311
    %v773 = vpop.f32.mrb[0].mxu0
    %v774 = vadd.f32 0.0, %v773
    %v775 = vpop.f32.mrb[0].mxu0
    %776 = vmatprep.mubr.f32.mxu0 %v316
    %777 = vmatmul.mubr.f32.gmra.mrb[0].mxu0 %v315
    %v778 = vpop.f32.mrb[0].mxu0
    %v779 = vadd.f32 0.0, %v778
    %v780 = vpop.f32.mrb[0].mxu0
    %781 = vmatprep.mubr.f32.mxu0 %v320
    %782 = vmatmul.mubr.f32.gmra.mrb[0].mxu0 %v319
    %v783 = vpop.f32.mrb[0].mxu0
    %v784 = vadd.f32 0.0, %v783
    %v785 = vpop.f32.mrb[0].mxu0
    %786 = vmatprep.mubr.f32.mxu0 %v324
    %787 = vmatmul.mubr.f32.gmra.mrb[0].mxu0 %v323
    %v788 = vpop.f32.mrb[0].mxu0
    %v789 = vadd.f32 0.0, %v788
    %v790 = vpop.f32.mrb[0].mxu0
    %791 = vmatprep.mubr.f32.mxu0 %v328
    %792 = vmatmul.mubr.f32.gmra.mrb[0].mxu0 %v327
    %v793 = vpop.f32.mrb[0].mxu0
    %v794 = vadd.f32 0.0, %v793
    %v795 = vpop.f32.mrb[0].mxu0
    %796 = vdwg.mxu0
    %797 = vmatprep.subr.mxu0 0.0
    %798 = vmatpush1.msra.mxu0 %v113
    %799 = vmatprep.subr.mxu0 0.0
    %800 = vmatpush1.msra.mxu0 %v114
    %801 = vmatprep.subr.mxu0 0.0
    %802 = vmatpush1.msra.mxu0 %v115
    %803 = vmatprep.subr.mxu0 0.0
    %804 = vmatpush1.msra.mxu0 %v116
    %805 = vmatprep.subr.mxu0 0.0
    %806 = vmatpush1.msra.mxu0 %v117
    %807 = vmatprep.subr.mxu0 0.0
    %808 = vmatpush1.msra.mxu0 %v118
    %809 = vmatprep.subr.mxu0 0.0
    %810 = vmatpush1.msra.mxu0 %v119
    %811 = vmatprep.subr.mxu0 0.0
    %812 = vmatpush1.msra.mxu0 %v120
    %813 = vmatprep.subr.mxu0 0.0
    %814 = vmatpush1.msra.mxu0 %v121
    %815 = vmatprep.subr.mxu0 0.0
    %816 = vmatpush1.msra.mxu0 %v122
    %817 = vmatprep.subr.mxu0 0.0
    %818 = vmatpush1.msra.mxu0 %v123
    %819 = vmatprep.subr.mxu0 0.0
    %820 = vmatpush1.msra.mxu0 %v124
    %821 = vmatprep.subr.mxu0 0.0
    %822 = vmatpush1.msra.mxu0 %v125
    %823 = vmatprep.subr.mxu0 0.0
    %824 = vmatpush1.msra.mxu0 %v126
    %825 = vmatprep.subr.mxu0 0.0
    %826 = vmatpush1.msra.mxu0 %v127
    %827 = vmatprep.subr.mxu0 0.0
    %828 = vmatpush1.msra.mxu0 %v128
    %829 = vmatprep.subr.mxu0 0.0
    %830 = vmatpush1.msra.mxu0 %v129
    %831 = vmatprep.subr.mxu0 0.0
    %832 = vmatpush1.msra.mxu0 %v130
    %833 = vmatprep.subr.mxu0 0.0
    %834 = vmatpush1.msra.mxu0 0.0
    %835 = vmatprep.subr.mxu0 0.0
    %836 = vmatpush1.msra.mxu0 0.0
    %837 = vmatprep.subr.mxu0 0.0
    %838 = vmatpush1.msra.mxu0 0.0
    %839 = vmatprep.subr.mxu0 0.0
    %840 = vmatpush1.msra.mxu0 0.0
    %841 = vmatprep.subr.mxu0 0.0
    %842 = vmatpush1.msra.mxu0 0.0
    %843 = vmatprep.subr.mxu0 0.0
    %844 = vmatpush1.msra.mxu0 0.0
    %845 = vmatprep.subr.mxu0 0.0
    %846 = vmatpush1.msra.mxu0 0.0
    %847 = vmatprep.subr.mxu0 0.0
    %848 = vmatpush1.msra.mxu0 0.0
    %849 = vmatprep.subr.mxu0 0.0
    %850 = vmatpush1.msra.mxu0 0.0
    %851 = vmatprep.subr.mxu0 0.0
    %852 = vmatpush1.msra.mxu0 0.0
    %853 = vmatprep.subr.mxu0 0.0
    %854 = vmatpush1.msra.mxu0 0.0
    %855 = vmatprep.subr.mxu0 0.0
    %856 = vmatpush1.msra.mxu0 0.0
    %857 = vmatprep.subr.mxu0 0.0
    %858 = vmatpush1.msra.mxu0 0.0
    %859 = vmatprep.subr.mxu0 0.0
    %860 = vmatpush1.msra.mxu0 0.0
    %861 = vmatprep.mubr.f32.mxu0 %v333
    %862 = vmatmul.mubr.f32.gmra.mrb[0].mxu0 %v133
    %v863 = vpop.f32.mrb[0].mxu0
    %v864 = vadd.f32 %v549, %v863
    %v865 = vpop.f32.mrb[0].mxu0
    %866 = vmatprep.mubr.f32.mxu0 %v336
    %867 = vmatmul.mubr.f32.gmra.mrb[0].mxu0 %v137
    %v868 = vpop.f32.mrb[0].mxu0
    %v869 = vadd.f32 %v554, %v868
    %v870 = vpop.f32.mrb[0].mxu0
    %871 = vmatprep.mubr.f32.mxu0 %v339
    %872 = vmatmul.mubr.f32.gmra.mrb[0].mxu0 %v141
    %v873 = vpop.f32.mrb[0].mxu0
    %v874 = vadd.f32 %v559, %v873
    %v875 = vpop.f32.mrb[0].mxu0
    %876 = vmatprep.mubr.f32.mxu0 %v342
    %877 = vmatmul.mubr.f32.gmra.mrb[0].mxu0 %v145
    %v878 = vpop.f32.mrb[0].mxu0
    %v879 = vadd.f32 %v564, %v878
    %v880 = vpop.f32.mrb[0].mxu0
    %881 = vmatprep.mubr.f32.mxu0 %v345
    %882 = vmatmul.mubr.f32.gmra.mrb[0].mxu0 %v149
    %v883 = vpop.f32.mrb[0].mxu0
    %v884 = vadd.f32 %v569, %v883
    %v885 = vpop.f32.mrb[0].mxu0
    %886 = vmatprep.mubr.f32.mxu0 %v348
    %887 = vmatmul.mubr.f32.gmra.mrb[0].mxu0 %v153
    %v888 = vpop.f32.mrb[0].mxu0
    %v889 = vadd.f32 %v574, %v888
    %v890 = vpop.f32.mrb[0].mxu0
    %891 = vmatprep.mubr.f32.mxu0 %v351
    %892 = vmatmul.mubr.f32.gmra.mrb[0].mxu0 %v157
    %v893 = vpop.f32.mrb[0].mxu0
    %v894 = vadd.f32 %v579, %v893
    %v895 = vpop.f32.mrb[0].mxu0
    %896 = vmatprep.mubr.f32.mxu0 %v354
    %897 = vmatmul.mubr.f32.gmra.mrb[0].mxu0 %v161
    %v898 = vpop.f32.mrb[0].mxu0
    %v899 = vadd.f32 %v584, %v898
    %v900 = vpop.f32.mrb[0].mxu0
    %901 = vmatprep.mubr.f32.mxu0 %v357
    %902 = vmatmul.mubr.f32.gmra.mrb[0].mxu0 %v165
    %v903 = vpop.f32.mrb[0].mxu0
    %v904 = vadd.f32 %v589, %v903
    %v905 = vpop.f32.mrb[0].mxu0
    %906 = vmatprep.mubr.f32.mxu0 %v360
    %907 = vmatmul.mubr.f32.gmra.mrb[0].mxu0 %v169
    %v908 = vpop.f32.mrb[0].mxu0
    %v909 = vadd.f32 %v594, %v908
    %v910 = vpop.f32.mrb[0].mxu0
    %911 = vmatprep.mubr.f32.mxu0 %v363
    %912 = vmatmul.mubr.f32.gmra.mrb[0].mxu0 %v173
    %v913 = vpop.f32.mrb[0].mxu0
    %v914 = vadd.f32 %v599, %v913
    %v915 = vpop.f32.mrb[0].mxu0
    %916 = vmatprep.mubr.f32.mxu0 %v366
    %917 = vmatmul.mubr.f32.gmra.mrb[0].mxu0 %v177
    %v918 = vpop.f32.mrb[0].mxu0
    %v919 = vadd.f32 %v604, %v918
    %v920 = vpop.f32.mrb[0].mxu0
    %921 = vmatprep.mubr.f32.mxu0 %v369
    %922 = vmatmul.mubr.f32.gmra.mrb[0].mxu0 %v181
    %v923 = vpop.f32.mrb[0].mxu0
    %v924 = vadd.f32 %v609, %v923
    %v925 = vpop.f32.mrb[0].mxu0
    %926 = vmatprep.mubr.f32.mxu0 %v372
    %927 = vmatmul.mubr.f32.gmra.mrb[0].mxu0 %v185
    %v928 = vpop.f32.mrb[0].mxu0
    %v929 = vadd.f32 %v614, %v928
    %v930 = vpop.f32.mrb[0].mxu0
    %931 = vmatprep.mubr.f32.mxu0 %v375
    %932 = vmatmul.mubr.f32.gmra.mrb[0].mxu0 %v189
    %v933 = vpop.f32.mrb[0].mxu0
    %v934 = vadd.f32 %v619, %v933
    %v935 = vpop.f32.mrb[0].mxu0
    %936 = vmatprep.mubr.f32.mxu0 %v378
    %937 = vmatmul.mubr.f32.gmra.mrb[0].mxu0 %v193
    %v938 = vpop.f32.mrb[0].mxu0
    %v939 = vadd.f32 %v624, %v938
    %v940 = vpop.f32.mrb[0].mxu0
    %941 = vmatprep.mubr.f32.mxu0 %v381
    %942 = vmatmul.mubr.f32.gmra.mrb[0].mxu0 %v197
    %v943 = vpop.f32.mrb[0].mxu0
    %v944 = vadd.f32 %v629, %v943
    %v945 = vpop.f32.mrb[0].mxu0
    %946 = vmatprep.mubr.f32.mxu0 %v384
    %947 = vmatmul.mubr.f32.gmra.mrb[0].mxu0 %v201
    %v948 = vpop.f32.mrb[0].mxu0
    %v949 = vadd.f32 %v634, %v948
    %v950 = vpop.f32.mrb[0].mxu0
    %951 = vmatprep.mubr.f32.mxu0 %v387
    %952 = vmatmul.mubr.f32.gmra.mrb[0].mxu0 %v205
    %v953 = vpop.f32.mrb[0].mxu0
    %v954 = vadd.f32 %v639, %v953
    %v955 = vpop.f32.mrb[0].mxu0
    %956 = vmatprep.mubr.f32.mxu0 %v390
    %957 = vmatmul.mubr.f32.gmra.mrb[0].mxu0 %v209
    %v958 = vpop.f32.mrb[0].mxu0
    %v959 = vadd.f32 %v644, %v958
    %v960 = vpop.f32.mrb[0].mxu0
    %961 = vmatprep.mubr.f32.mxu0 %v393
    %962 = vmatmul.mubr.f32.gmra.mrb[0].mxu0 %v213
    %v963 = vpop.f32.mrb[0].mxu0
    %v964 = vadd.f32 %v649, %v963
    %v965 = vpop.f32.mrb[0].mxu0
    %966 = vmatprep.mubr.f32.mxu0 %v396
    %967 = vmatmul.mubr.f32.gmra.mrb[0].mxu0 %v217
    %v968 = vpop.f32.mrb[0].mxu0
    %v969 = vadd.f32 %v654, %v968
    %v970 = vpop.f32.mrb[0].mxu0
    %971 = vmatprep.mubr.f32.mxu0 %v399
    %972 = vmatmul.mubr.f32.gmra.mrb[0].mxu0 %v221
    %v973 = vpop.f32.mrb[0].mxu0
    %v974 = vadd.f32 %v659, %v973
    %v975 = vpop.f32.mrb[0].mxu0
    %976 = vmatprep.mubr.f32.mxu0 %v402
    %977 = vmatmul.mubr.f32.gmra.mrb[0].mxu0 %v225
    %v978 = vpop.f32.mrb[0].mxu0
    %v979 = vadd.f32 %v664, %v978
    %v980 = vpop.f32.mrb[0].mxu0
    %981 = vmatprep.mubr.f32.mxu0 %v405
    %982 = vmatmul.mubr.f32.gmra.mrb[0].mxu0 %v229
    %v983 = vpop.f32.mrb[0].mxu0
    %v984 = vadd.f32 %v669, %v983
    %v985 = vpop.f32.mrb[0].mxu0
    %986 = vmatprep.mubr.f32.mxu0 %v408
    %987 = vmatmul.mubr.f32.gmra.mrb[0].mxu0 %v233
    %v988 = vpop.f32.mrb[0].mxu0
    %v989 = vadd.f32 %v674, %v988
    %v990 = vpop.f32.mrb[0].mxu0
    %991 = vmatprep.mubr.f32.mxu0 %v411
    %992 = vmatmul.mubr.f32.gmra.mrb[0].mxu0 %v237
    %v993 = vpop.f32.mrb[0].mxu0
    %v994 = vadd.f32 %v679, %v993
    %v995 = vpop.f32.mrb[0].mxu0
    %996 = vmatprep.mubr.f32.mxu0 %v414
    %997 = vmatmul.mubr.f32.gmra.mrb[0].mxu0 %v241
    %v998 = vpop.f32.mrb[0].mxu0
    %v999 = vadd.f32 %v684, %v998
    %v1000 = vpop.f32.mrb[0].mxu0
    %1001 = vmatprep.mubr.f32.mxu0 %v417
    %1002 = vmatmul.mubr.f32.gmra.mrb[0].mxu0 %v245
    %v1003 = vpop.f32.mrb[0].mxu0
    %v1004 = vadd.f32 %v689, %v1003
    %v1005 = vpop.f32.mrb[0].mxu0
    %1006 = vmatprep.mubr.f32.mxu0 %v420
    %1007 = vmatmul.mubr.f32.gmra.mrb[0].mxu0 %v249
    %v1008 = vpop.f32.mrb[0].mxu0
    %v1009 = vadd.f32 %v694, %v1008
    %v1010 = vpop.f32.mrb[0].mxu0
    %1011 = vmatprep.mubr.f32.mxu0 %v423
    %1012 = vmatmul.mubr.f32.gmra.mrb[0].mxu0 %v253
    %v1013 = vpop.f32.mrb[0].mxu0
    %v1014 = vadd.f32 %v699, %v1013
    %v1015 = vpop.f32.mrb[0].mxu0
    %1016 = vmatprep.mubr.f32.mxu0 %v426
    %1017 = vmatmul.mubr.f32.gmra.mrb[0].mxu0 %v257
    %v1018 = vpop.f32.mrb[0].mxu0
    %v1019 = vadd.f32 %v704, %v1018
    %v1020 = vpop.f32.mrb[0].mxu0
    %1021 = vmatprep.mubr.f32.mxu0 %v429
    %1022 = vmatmul.mubr.f32.gmra.mrb[0].mxu0 %v261
    %v1023 = vpop.f32.mrb[0].mxu0
    %v1024 = vadd.f32 %v709, %v1023
    %v1025 = vpop.f32.mrb[0].mxu0
    %1026 = vmatprep.mubr.f32.mxu0 %v432
    %1027 = vmatmul.mubr.f32.gmra.mrb[0].mxu0 %v265
    %v1028 = vpop.f32.mrb[0].mxu0
    %v1029 = vadd.f32 %v714, %v1028
    %v1030 = vpop.f32.mrb[0].mxu0
    %1031 = vmatprep.mubr.f32.mxu0 %v435
    %1032 = vmatmul.mubr.f32.gmra.mrb[0].mxu0 %v269
    %v1033 = vpop.f32.mrb[0].mxu0
    %v1034 = vadd.f32 %v719, %v1033
    %v1035 = vpop.f32.mrb[0].mxu0
    %1036 = vmatprep.mubr.f32.mxu0 %v438
    %1037 = vmatmul.mubr.f32.gmra.mrb[0].mxu0 %v273
    %v1038 = vpop.f32.mrb[0].mxu0
    %v1039 = vadd.f32 %v724, %v1038
    %v1040 = vpop.f32.mrb[0].mxu0
    %1041 = vmatprep.mubr.f32.mxu0 %v441
    %1042 = vmatmul.mubr.f32.gmra.mrb[0].mxu0 %v277
    %v1043 = vpop.f32.mrb[0].mxu0
    %v1044 = vadd.f32 %v729, %v1043
    %v1045 = vpop.f32.mrb[0].mxu0
    %1046 = vmatprep.mubr.f32.mxu0 %v444
    %1047 = vmatmul.mubr.f32.gmra.mrb[0].mxu0 %v281
    %v1048 = vpop.f32.mrb[0].mxu0
    %v1049 = vadd.f32 %v734, %v1048
    %v1050 = vpop.f32.mrb[0].mxu0
    %1051 = vmatprep.mubr.f32.mxu0 %v447
    %1052 = vmatmul.mubr.f32.gmra.mrb[0].mxu0 %v285
    %v1053 = vpop.f32.mrb[0].mxu0
    %v1054 = vadd.f32 %v739, %v1053
    %v1055 = vpop.f32.mrb[0].mxu0
    %1056 = vmatprep.mubr.f32.mxu0 %v450
    %1057 = vmatmul.mubr.f32.gmra.mrb[0].mxu0 %v289
    %v1058 = vpop.f32.mrb[0].mxu0
    %v1059 = vadd.f32 %v744, %v1058
    %v1060 = vpop.f32.mrb[0].mxu0
    %1061 = vmatprep.mubr.f32.mxu0 %v453
    %1062 = vmatmul.mubr.f32.gmra.mrb[0].mxu0 %v293
    %v1063 = vpop.f32.mrb[0].mxu0
    %v1064 = vadd.f32 %v749, %v1063
    %v1065 = vpop.f32.mrb[0].mxu0
    %1066 = vmatprep.mubr.f32.mxu0 %v456
    %1067 = vmatmul.mubr.f32.gmra.mrb[0].mxu0 %v297
    %v1068 = vpop.f32.mrb[0].mxu0
    %v1069 = vadd.f32 %v754, %v1068
    %v1070 = vpop.f32.mrb[0].mxu0
    %1071 = vmatprep.mubr.f32.mxu0 %v459
    %1072 = vmatmul.mubr.f32.gmra.mrb[0].mxu0 %v301
    %v1073 = vpop.f32.mrb[0].mxu0
    %v1074 = vadd.f32 %v759, %v1073
    %v1075 = vpop.f32.mrb[0].mxu0
    %1076 = vmatprep.mubr.f32.mxu0 %v462
    %1077 = vmatmul.mubr.f32.gmra.mrb[0].mxu0 %v305
    %v1078 = vpop.f32.mrb[0].mxu0
    %v1079 = vadd.f32 %v764, %v1078
    %v1080 = vpop.f32.mrb[0].mxu0
    %1081 = vmatprep.mubr.f32.mxu0 %v465
    %1082 = vmatmul.mubr.f32.gmra.mrb[0].mxu0 %v309
    %v1083 = vpop.f32.mrb[0].mxu0
    %v1084 = vadd.f32 %v769, %v1083
    %v1085 = vpop.f32.mrb[0].mxu0
    %1086 = vmatprep.mubr.f32.mxu0 %v468
    %1087 = vmatmul.mubr.f32.gmra.mrb[0].mxu0 %v313
    %v1088 = vpop.f32.mrb[0].mxu0
    %v1089 = vadd.f32 %v774, %v1088
    %v1090 = vpop.f32.mrb[0].mxu0
    %1091 = vmatprep.mubr.f32.mxu0 %v471
    %1092 = vmatmul.mubr.f32.gmra.mrb[0].mxu0 %v317
    %v1093 = vpop.f32.mrb[0].mxu0
    %v1094 = vadd.f32 %v779, %v1093
    %v1095 = vpop.f32.mrb[0].mxu0
    %1096 = vmatprep.mubr.f32.mxu0 %v474
    %1097 = vmatmul.mubr.f32.gmra.mrb[0].mxu0 %v321
    %v1098 = vpop.f32.mrb[0].mxu0
    %v1099 = vadd.f32 %v784, %v1098
    %v1100 = vpop.f32.mrb[0].mxu0
    %1101 = vmatprep.mubr.f32.mxu0 %v477
    %1102 = vmatmul.mubr.f32.gmra.mrb[0].mxu0 %v325
    %v1103 = vpop.f32.mrb[0].mxu0
    %v1104 = vadd.f32 %v789, %v1103
    %v1105 = vpop.f32.mrb[0].mxu0
    %1106 = vmatprep.mubr.f32.mxu0 %v480
    %1107 = vmatmul.mubr.f32.gmra.mrb[0].mxu0 %v329
    %v1108 = vpop.f32.mrb[0].mxu0
    %v1109 = vadd.f32 %v794, %v1108
    %v1110 = vpop.f32.mrb[0].mxu0
    %1111 = vdwg.mxu0
    %vm1112 = vcmask 400384
    %v1113 = vsel %vm1112, %v864, 0.0
    %1114 = vadd.xlane.f32.xlu0 %v1113
    %v1115 = vpop.xlane.xlu0 %1114
    %v1116 = vsel %vm1112, %v869, 0.0
    %1117 = vadd.xlane.f32.xlu0 %v1116
    %v1118 = vpop.xlane.xlu0 %1117
    %v1119 = vsel %vm1112, %v874, 0.0
    %1120 = vadd.xlane.f32.xlu0 %v1119
    %v1121 = vpop.xlane.xlu0 %1120
    %v1122 = vsel %vm1112, %v879, 0.0
    %1123 = vadd.xlane.f32.xlu0 %v1122
    %v1124 = vpop.xlane.xlu0 %1123
    %v1125 = vsel %vm1112, %v884, 0.0
    %1126 = vadd.xlane.f32.xlu0 %v1125
    %v1127 = vpop.xlane.xlu0 %1126
    %v1128 = vsel %vm1112, %v889, 0.0
    %1129 = vadd.xlane.f32.xlu0 %v1128
    %v1130 = vpop.xlane.xlu0 %1129
    %v1131 = vsel %vm1112, %v894, 0.0
    %1132 = vadd.xlane.f32.xlu0 %v1131
    %v1133 = vpop.xlane.xlu0 %1132
    %v1134 = vsel %vm1112, %v899, 0.0
    %1135 = vadd.xlane.f32.xlu0 %v1134
    %v1136 = vpop.xlane.xlu0 %1135
    %v1137 = vsel %vm1112, %v904, 0.0
    %1138 = vadd.xlane.f32.xlu0 %v1137
    %v1139 = vpop.xlane.xlu0 %1138
    %v1140 = vsel %vm1112, %v909, 0.0
    %1141 = vadd.xlane.f32.xlu0 %v1140
    %v1142 = vpop.xlane.xlu0 %1141
    %v1143 = vsel %vm1112, %v914, 0.0
    %1144 = vadd.xlane.f32.xlu0 %v1143
    %v1145 = vpop.xlane.xlu0 %1144
    %v1146 = vsel %vm1112, %v919, 0.0
    %1147 = vadd.xlane.f32.xlu0 %v1146
    %v1148 = vpop.xlane.xlu0 %1147
    %v1149 = vsel %vm1112, %v924, 0.0
    %1150 = vadd.xlane.f32.xlu0 %v1149
    %v1151 = vpop.xlane.xlu0 %1150
    %v1152 = vsel %vm1112, %v929, 0.0
    %1153 = vadd.xlane.f32.xlu0 %v1152
    %v1154 = vpop.xlane.xlu0 %1153
    %v1155 = vsel %vm1112, %v934, 0.0
    %1156 = vadd.xlane.f32.xlu0 %v1155
    %v1157 = vpop.xlane.xlu0 %1156
    %v1158 = vsel %vm1112, %v939, 0.0
    %1159 = vadd.xlane.f32.xlu0 %v1158
    %v1160 = vpop.xlane.xlu0 %1159
    %v1161 = vsel %vm1112, %v944, 0.0
    %1162 = vadd.xlane.f32.xlu0 %v1161
    %v1163 = vpop.xlane.xlu0 %1162
    %v1164 = vsel %vm1112, %v949, 0.0
    %1165 = vadd.xlane.f32.xlu0 %v1164
    %v1166 = vpop.xlane.xlu0 %1165
    %v1167 = vsel %vm1112, %v954, 0.0
    %1168 = vadd.xlane.f32.xlu0 %v1167
    %v1169 = vpop.xlane.xlu0 %1168
    %v1170 = vsel %vm1112, %v959, 0.0
    %1171 = vadd.xlane.f32.xlu0 %v1170
    %v1172 = vpop.xlane.xlu0 %1171
    %v1173 = vsel %vm1112, %v964, 0.0
    %1174 = vadd.xlane.f32.xlu0 %v1173
    %v1175 = vpop.xlane.xlu0 %1174
    %v1176 = vsel %vm1112, %v969, 0.0
    %1177 = vadd.xlane.f32.xlu0 %v1176
    %v1178 = vpop.xlane.xlu0 %1177
    %v1179 = vsel %vm1112, %v974, 0.0
    %1180 = vadd.xlane.f32.xlu0 %v1179
    %v1181 = vpop.xlane.xlu0 %1180
    %v1182 = vsel %vm1112, %v979, 0.0
    %1183 = vadd.xlane.f32.xlu0 %v1182
    %v1184 = vpop.xlane.xlu0 %1183
    %v1185 = vsel %vm1112, %v984, 0.0
    %1186 = vadd.xlane.f32.xlu0 %v1185
    %v1187 = vpop.xlane.xlu0 %1186
    %v1188 = vsel %vm1112, %v989, 0.0
    %1189 = vadd.xlane.f32.xlu0 %v1188
    %v1190 = vpop.xlane.xlu0 %1189
    %v1191 = vsel %vm1112, %v994, 0.0
    %1192 = vadd.xlane.f32.xlu0 %v1191
    %v1193 = vpop.xlane.xlu0 %1192
    %v1194 = vsel %vm1112, %v999, 0.0
    %1195 = vadd.xlane.f32.xlu0 %v1194
    %v1196 = vpop.xlane.xlu0 %1195
    %v1197 = vsel %vm1112, %v1004, 0.0
    %1198 = vadd.xlane.f32.xlu0 %v1197
    %v1199 = vpop.xlane.xlu0 %1198
    %v1200 = vsel %vm1112, %v1009, 0.0
    %1201 = vadd.xlane.f32.xlu0 %v1200
    %v1202 = vpop.xlane.xlu0 %1201
    %v1203 = vsel %vm1112, %v1014, 0.0
    %1204 = vadd.xlane.f32.xlu0 %v1203
    %v1205 = vpop.xlane.xlu0 %1204
    %v1206 = vsel %vm1112, %v1019, 0.0
    %1207 = vadd.xlane.f32.xlu0 %v1206
    %v1208 = vpop.xlane.xlu0 %1207
    %v1209 = vsel %vm1112, %v1024, 0.0
    %1210 = vadd.xlane.f32.xlu0 %v1209
    %v1211 = vpop.xlane.xlu0 %1210
    %v1212 = vsel %vm1112, %v1029, 0.0
    %1213 = vadd.xlane.f32.xlu0 %v1212
    %v1214 = vpop.xlane.xlu0 %1213
    %v1215 = vsel %vm1112, %v1034, 0.0
    %1216 = vadd.xlane.f32.xlu0 %v1215
    %v1217 = vpop.xlane.xlu0 %1216
    %v1218 = vsel %vm1112, %v1039, 0.0
    %1219 = vadd.xlane.f32.xlu0 %v1218
    %v1220 = vpop.xlane.xlu0 %1219
    %v1221 = vsel %vm1112, %v1044, 0.0
    %1222 = vadd.xlane.f32.xlu0 %v1221
    %v1223 = vpop.xlane.xlu0 %1222
    %v1224 = vsel %vm1112, %v1049, 0.0
    %1225 = vadd.xlane.f32.xlu0 %v1224
    %v1226 = vpop.xlane.xlu0 %1225
    %v1227 = vsel %vm1112, %v1054, 0.0
    %1228 = vadd.xlane.f32.xlu0 %v1227
    %v1229 = vpop.xlane.xlu0 %1228
    %v1230 = vsel %vm1112, %v1059, 0.0
    %1231 = vadd.xlane.f32.xlu0 %v1230
    %v1232 = vpop.xlane.xlu0 %1231
    %v1233 = vsel %vm1112, %v1064, 0.0
    %1234 = vadd.xlane.f32.xlu0 %v1233
    %v1235 = vpop.xlane.xlu0 %1234
    %v1236 = vsel %vm1112, %v1069, 0.0
    %1237 = vadd.xlane.f32.xlu0 %v1236
    %v1238 = vpop.xlane.xlu0 %1237
    %v1239 = vsel %vm1112, %v1074, 0.0
    %1240 = vadd.xlane.f32.xlu0 %v1239
    %v1241 = vpop.xlane.xlu0 %1240
    %v1242 = vsel %vm1112, %v1079, 0.0
    %1243 = vadd.xlane.f32.xlu0 %v1242
    %v1244 = vpop.xlane.xlu0 %1243
    %v1245 = vsel %vm1112, %v1084, 0.0
    %1246 = vadd.xlane.f32.xlu0 %v1245
    %v1247 = vpop.xlane.xlu0 %1246
    %v1248 = vsel %vm1112, %v1089, 0.0
    %1249 = vadd.xlane.f32.xlu0 %v1248
    %v1250 = vpop.xlane.xlu0 %1249
    %v1251 = vsel %vm1112, %v1094, 0.0
    %1252 = vadd.xlane.f32.xlu0 %v1251
    %v1253 = vpop.xlane.xlu0 %1252
    %v1254 = vsel %vm1112, %v1099, 0.0
    %1255 = vadd.xlane.f32.xlu0 %v1254
    %v1256 = vpop.xlane.xlu0 %1255
    %v1257 = vsel %vm1112, %v1104, 0.0
    %1258 = vadd.xlane.f32.xlu0 %v1257
    %v1259 = vpop.xlane.xlu0 %1258
    %v1260 = vsel %vm1112, %v1109, 0.0
    %1261 = vadd.xlane.f32.xlu0 %v1260
    %v1262 = vpop.xlane.xlu0 %1261
    %v1263 = vmul.f32 %v864, %v864
    %v1264 = vmul.f32 %v869, %v869
    %v1265 = vmul.f32 %v874, %v874
    %v1266 = vmul.f32 %v879, %v879
    %v1267 = vmul.f32 %v884, %v884
    %v1268 = vmul.f32 %v889, %v889
    %v1269 = vmul.f32 %v894, %v894
    %v1270 = vmul.f32 %v899, %v899
    %v1271 = vmul.f32 %v904, %v904
    %v1272 = vmul.f32 %v909, %v909
    %v1273 = vmul.f32 %v914, %v914
    %v1274 = vmul.f32 %v919, %v919
    %v1275 = vmul.f32 %v924, %v924
    %v1276 = vmul.f32 %v929, %v929
    %v1277 = vmul.f32 %v934, %v934
    %v1278 = vmul.f32 %v939, %v939
    %v1279 = vmul.f32 %v944, %v944
    %v1280 = vmul.f32 %v949, %v949
    %v1281 = vmul.f32 %v954, %v954
    %v1282 = vmul.f32 %v959, %v959
    %v1283 = vmul.f32 %v964, %v964
    %v1284 = vmul.f32 %v969, %v969
    %v1285 = vmul.f32 %v974, %v974
    %v1286 = vmul.f32 %v979, %v979
    %v1287 = vmul.f32 %v984, %v984
    %v1288 = vmul.f32 %v989, %v989
    %v1289 = vmul.f32 %v994, %v994
    %v1290 = vmul.f32 %v999, %v999
    %v1291 = vmul.f32 %v1004, %v1004
    %v1292 = vmul.f32 %v1009, %v1009
    %v1293 = vmul.f32 %v1014, %v1014
    %v1294 = vmul.f32 %v1019, %v1019
    %v1295 = vmul.f32 %v1024, %v1024
    %v1296 = vmul.f32 %v1029, %v1029
    %v1297 = vmul.f32 %v1034, %v1034
    %v1298 = vmul.f32 %v1039, %v1039
    %v1299 = vmul.f32 %v1044, %v1044
    %v1300 = vmul.f32 %v1049, %v1049
    %v1301 = vmul.f32 %v1054, %v1054
    %v1302 = vmul.f32 %v1059, %v1059
    %v1303 = vmul.f32 %v1064, %v1064
    %v1304 = vmul.f32 %v1069, %v1069
    %v1305 = vmul.f32 %v1074, %v1074
    %v1306 = vmul.f32 %v1079, %v1079
    %v1307 = vmul.f32 %v1084, %v1084
    %v1308 = vmul.f32 %v1089, %v1089
    %v1309 = vmul.f32 %v1094, %v1094
    %v1310 = vmul.f32 %v1099, %v1099
    %v1311 = vmul.f32 %v1104, %v1104
    %v1312 = vmul.f32 %v1109, %v1109
    %v1313 = vsel %vm1112, %v1263, 0.0
    %1314 = vadd.xlane.f32.xlu0 %v1313
    %v1315 = vpop.xlane.xlu0 %1314
    %v1316 = vsel %vm1112, %v1264, 0.0
    %1317 = vadd.xlane.f32.xlu0 %v1316
    %v1318 = vpop.xlane.xlu0 %1317
    %v1319 = vsel %vm1112, %v1265, 0.0
    %1320 = vadd.xlane.f32.xlu0 %v1319
    %v1321 = vpop.xlane.xlu0 %1320
    %v1322 = vsel %vm1112, %v1266, 0.0
    %1323 = vadd.xlane.f32.xlu0 %v1322
    %v1324 = vpop.xlane.xlu0 %1323
    %v1325 = vsel %vm1112, %v1267, 0.0
    %1326 = vadd.xlane.f32.xlu0 %v1325
    %v1327 = vpop.xlane.xlu0 %1326
    %v1328 = vsel %vm1112, %v1268, 0.0
    %1329 = vadd.xlane.f32.xlu0 %v1328
    %v1330 = vpop.xlane.xlu0 %1329
    %v1331 = vsel %vm1112, %v1269, 0.0
    %1332 = vadd.xlane.f32.xlu0 %v1331
    %v1333 = vpop.xlane.xlu0 %1332
    %v1334 = vsel %vm1112, %v1270, 0.0
    %1335 = vadd.xlane.f32.xlu0 %v1334
    %v1336 = vpop.xlane.xlu0 %1335
    %v1337 = vsel %vm1112, %v1271, 0.0
    %1338 = vadd.xlane.f32.xlu0 %v1337
    %v1339 = vpop.xlane.xlu0 %1338
    %v1340 = vsel %vm1112, %v1272, 0.0
    %1341 = vadd.xlane.f32.xlu0 %v1340
    %v1342 = vpop.xlane.xlu0 %1341
    %v1343 = vsel %vm1112, %v1273, 0.0
    %1344 = vadd.xlane.f32.xlu0 %v1343
    %v1345 = vpop.xlane.xlu0 %1344
    %v1346 = vsel %vm1112, %v1274, 0.0
    %1347 = vadd.xlane.f32.xlu0 %v1346
    %v1348 = vpop.xlane.xlu0 %1347
    %v1349 = vsel %vm1112, %v1275, 0.0
    %1350 = vadd.xlane.f32.xlu0 %v1349
    %v1351 = vpop.xlane.xlu0 %1350
    %v1352 = vsel %vm1112, %v1276, 0.0
    %1353 = vadd.xlane.f32.xlu0 %v1352
    %v1354 = vpop.xlane.xlu0 %1353
    %v1355 = vsel %vm1112, %v1277, 0.0
    %1356 = vadd.xlane.f32.xlu0 %v1355
    %v1357 = vpop.xlane.xlu0 %1356
    %v1358 = vsel %vm1112, %v1278, 0.0
    %1359 = vadd.xlane.f32.xlu0 %v1358
    %v1360 = vpop.xlane.xlu0 %1359
    %v1361 = vsel %vm1112, %v1279, 0.0
    %1362 = vadd.xlane.f32.xlu0 %v1361
    %v1363 = vpop.xlane.xlu0 %1362
    %v1364 = vsel %vm1112, %v1280, 0.0
    %1365 = vadd.xlane.f32.xlu0 %v1364
    %v1366 = vpop.xlane.xlu0 %1365
    %v1367 = vsel %vm1112, %v1281, 0.0
    %1368 = vadd.xlane.f32.xlu0 %v1367
    %v1369 = vpop.xlane.xlu0 %1368
    %v1370 = vsel %vm1112, %v1282, 0.0
    %1371 = vadd.xlane.f32.xlu0 %v1370
    %v1372 = vpop.xlane.xlu0 %1371
    %v1373 = vsel %vm1112, %v1283, 0.0
    %1374 = vadd.xlane.f32.xlu0 %v1373
    %v1375 = vpop.xlane.xlu0 %1374
    %v1376 = vsel %vm1112, %v1284, 0.0
    %1377 = vadd.xlane.f32.xlu0 %v1376
    %v1378 = vpop.xlane.xlu0 %1377
    %v1379 = vsel %vm1112, %v1285, 0.0
    %1380 = vadd.xlane.f32.xlu0 %v1379
    %v1381 = vpop.xlane.xlu0 %1380
    %v1382 = vsel %vm1112, %v1286, 0.0
    %1383 = vadd.xlane.f32.xlu0 %v1382
    %v1384 = vpop.xlane.xlu0 %1383
    %v1385 = vsel %vm1112, %v1287, 0.0
    %1386 = vadd.xlane.f32.xlu0 %v1385
    %v1387 = vpop.xlane.xlu0 %1386
    %v1388 = vsel %vm1112, %v1288, 0.0
    %1389 = vadd.xlane.f32.xlu0 %v1388
    %v1390 = vpop.xlane.xlu0 %1389
    %v1391 = vsel %vm1112, %v1289, 0.0
    %1392 = vadd.xlane.f32.xlu0 %v1391
    %v1393 = vpop.xlane.xlu0 %1392
    %v1394 = vsel %vm1112, %v1290, 0.0
    %1395 = vadd.xlane.f32.xlu0 %v1394
    %v1396 = vpop.xlane.xlu0 %1395
    %v1397 = vsel %vm1112, %v1291, 0.0
    %1398 = vadd.xlane.f32.xlu0 %v1397
    %v1399 = vpop.xlane.xlu0 %1398
    %v1400 = vsel %vm1112, %v1292, 0.0
    %1401 = vadd.xlane.f32.xlu0 %v1400
    %v1402 = vpop.xlane.xlu0 %1401
    %v1403 = vsel %vm1112, %v1293, 0.0
    %1404 = vadd.xlane.f32.xlu0 %v1403
    %v1405 = vpop.xlane.xlu0 %1404
    %v1406 = vsel %vm1112, %v1294, 0.0
    %1407 = vadd.xlane.f32.xlu0 %v1406
    %v1408 = vpop.xlane.xlu0 %1407
    %v1409 = vsel %vm1112, %v1295, 0.0
    %1410 = vadd.xlane.f32.xlu0 %v1409
    %v1411 = vpop.xlane.xlu0 %1410
    %v1412 = vsel %vm1112, %v1296, 0.0
    %1413 = vadd.xlane.f32.xlu0 %v1412
    %v1414 = vpop.xlane.xlu0 %1413
    %v1415 = vsel %vm1112, %v1297, 0.0
    %1416 = vadd.xlane.f32.xlu0 %v1415
    %v1417 = vpop.xlane.xlu0 %1416
    %v1418 = vsel %vm1112, %v1298, 0.0
    %1419 = vadd.xlane.f32.xlu0 %v1418
    %v1420 = vpop.xlane.xlu0 %1419
    %v1421 = vsel %vm1112, %v1299, 0.0
    %1422 = vadd.xlane.f32.xlu0 %v1421
    %v1423 = vpop.xlane.xlu0 %1422
    %v1424 = vsel %vm1112, %v1300, 0.0
    %1425 = vadd.xlane.f32.xlu0 %v1424
    %v1426 = vpop.xlane.xlu0 %1425
    %v1427 = vsel %vm1112, %v1301, 0.0
    %1428 = vadd.xlane.f32.xlu0 %v1427
    %v1429 = vpop.xlane.xlu0 %1428
    %v1430 = vsel %vm1112, %v1302, 0.0
    %1431 = vadd.xlane.f32.xlu0 %v1430
    %v1432 = vpop.xlane.xlu0 %1431
    %v1433 = vsel %vm1112, %v1303, 0.0
    %1434 = vadd.xlane.f32.xlu0 %v1433
    %v1435 = vpop.xlane.xlu0 %1434
    %v1436 = vsel %vm1112, %v1304, 0.0
    %1437 = vadd.xlane.f32.xlu0 %v1436
    %v1438 = vpop.xlane.xlu0 %1437
    %v1439 = vsel %vm1112, %v1305, 0.0
    %1440 = vadd.xlane.f32.xlu0 %v1439
    %v1441 = vpop.xlane.xlu0 %1440
    %v1442 = vsel %vm1112, %v1306, 0.0
    %1443 = vadd.xlane.f32.xlu0 %v1442
    %v1444 = vpop.xlane.xlu0 %1443
    %v1445 = vsel %vm1112, %v1307, 0.0
    %1446 = vadd.xlane.f32.xlu0 %v1445
    %v1447 = vpop.xlane.xlu0 %1446
    %v1448 = vsel %vm1112, %v1308, 0.0
    %1449 = vadd.xlane.f32.xlu0 %v1448
    %v1450 = vpop.xlane.xlu0 %1449
    %v1451 = vsel %vm1112, %v1309, 0.0
    %1452 = vadd.xlane.f32.xlu0 %v1451
    %v1453 = vpop.xlane.xlu0 %1452
    %v1454 = vsel %vm1112, %v1310, 0.0
    %1455 = vadd.xlane.f32.xlu0 %v1454
    %v1456 = vpop.xlane.xlu0 %1455
    %v1457 = vsel %vm1112, %v1311, 0.0
    %1458 = vadd.xlane.f32.xlu0 %v1457
    %v1459 = vpop.xlane.xlu0 %1458
    %v1460 = vsel %vm1112, %v1312, 0.0
    %1461 = vadd.xlane.f32.xlu0 %v1460
    %v1462 = vpop.xlane.xlu0 %1461
    %v1463 = vmul.f32 %v1115, 0.020408163
    %v1464 = vmul.f32 %v1118, 0.020408163
    %v1465 = vmul.f32 %v1121, 0.020408163
    %v1466 = vmul.f32 %v1124, 0.020408163
    %v1467 = vmul.f32 %v1127, 0.020408163
    %v1468 = vmul.f32 %v1130, 0.020408163
    %v1469 = vmul.f32 %v1133, 0.020408163
    %v1470 = vmul.f32 %v1136, 0.020408163
    %v1471 = vmul.f32 %v1139, 0.020408163
    %v1472 = vmul.f32 %v1142, 0.020408163
    %v1473 = vmul.f32 %v1145, 0.020408163
    %v1474 = vmul.f32 %v1148, 0.020408163
    %v1475 = vmul.f32 %v1151, 0.020408163
    %v1476 = vmul.f32 %v1154, 0.020408163
    %v1477 = vmul.f32 %v1157, 0.020408163
    %v1478 = vmul.f32 %v1160, 0.020408163
    %v1479 = vmul.f32 %v1163, 0.020408163
    %v1480 = vmul.f32 %v1166, 0.020408163
    %v1481 = vmul.f32 %v1169, 0.020408163
    %v1482 = vmul.f32 %v1172, 0.020408163
    %v1483 = vmul.f32 %v1175, 0.020408163
    %v1484 = vmul.f32 %v1178, 0.020408163
    %v1485 = vmul.f32 %v1181, 0.020408163
    %v1486 = vmul.f32 %v1184, 0.020408163
    %v1487 = vmul.f32 %v1187, 0.020408163
    %v1488 = vmul.f32 %v1190, 0.020408163
    %v1489 = vmul.f32 %v1193, 0.020408163
    %v1490 = vmul.f32 %v1196, 0.020408163
    %v1491 = vmul.f32 %v1199, 0.020408163
    %v1492 = vmul.f32 %v1202, 0.020408163
    %v1493 = vmul.f32 %v1205, 0.020408163
    %v1494 = vmul.f32 %v1208, 0.020408163
    %v1495 = vmul.f32 %v1211, 0.020408163
    %v1496 = vmul.f32 %v1214, 0.020408163
    %v1497 = vmul.f32 %v1217, 0.020408163
    %v1498 = vmul.f32 %v1220, 0.020408163
    %v1499 = vmul.f32 %v1223, 0.020408163
    %v1500 = vmul.f32 %v1226, 0.020408163
    %v1501 = vmul.f32 %v1229, 0.020408163
    %v1502 = vmul.f32 %v1232, 0.020408163
    %v1503 = vmul.f32 %v1235, 0.020408163
    %v1504 = vmul.f32 %v1238, 0.020408163
    %v1505 = vmul.f32 %v1241, 0.020408163
    %v1506 = vmul.f32 %v1244, 0.020408163
    %v1507 = vmul.f32 %v1247, 0.020408163
    %v1508 = vmul.f32 %v1250, 0.020408163
    %v1509 = vmul.f32 %v1253, 0.020408163
    %v1510 = vmul.f32 %v1256, 0.020408163
    %v1511 = vmul.f32 %v1259, 0.020408163
    %v1512 = vmul.f32 %v1262, 0.020408163
    %v1513 = vmul.f32 %v1315, 0.020408163
    %v1514 = vmul.f32 %v1318, 0.020408163
    %v1515 = vmul.f32 %v1321, 0.020408163
    %v1516 = vmul.f32 %v1324, 0.020408163
    %v1517 = vmul.f32 %v1327, 0.020408163
    %v1518 = vmul.f32 %v1330, 0.020408163
    %v1519 = vmul.f32 %v1333, 0.020408163
    %v1520 = vmul.f32 %v1336, 0.020408163
    %v1521 = vmul.f32 %v1339, 0.020408163
    %v1522 = vmul.f32 %v1342, 0.020408163
    %v1523 = vmul.f32 %v1345, 0.020408163
    %v1524 = vmul.f32 %v1348, 0.020408163
    %v1525 = vmul.f32 %v1351, 0.020408163
    %v1526 = vmul.f32 %v1354, 0.020408163
    %v1527 = vmul.f32 %v1357, 0.020408163
    %v1528 = vmul.f32 %v1360, 0.020408163
    %v1529 = vmul.f32 %v1363, 0.020408163
    %v1530 = vmul.f32 %v1366, 0.020408163
    %v1531 = vmul.f32 %v1369, 0.020408163
    %v1532 = vmul.f32 %v1372, 0.020408163
    %v1533 = vmul.f32 %v1375, 0.020408163
    %v1534 = vmul.f32 %v1378, 0.020408163
    %v1535 = vmul.f32 %v1381, 0.020408163
    %v1536 = vmul.f32 %v1384, 0.020408163
    %v1537 = vmul.f32 %v1387, 0.020408163
    %v1538 = vmul.f32 %v1390, 0.020408163
    %v1539 = vmul.f32 %v1393, 0.020408163
    %v1540 = vmul.f32 %v1396, 0.020408163
    %v1541 = vmul.f32 %v1399, 0.020408163
    %v1542 = vmul.f32 %v1402, 0.020408163
    %v1543 = vmul.f32 %v1405, 0.020408163
    %v1544 = vmul.f32 %v1408, 0.020408163
    %v1545 = vmul.f32 %v1411, 0.020408163
    %v1546 = vmul.f32 %v1414, 0.020408163
    %v1547 = vmul.f32 %v1417, 0.020408163
    %v1548 = vmul.f32 %v1420, 0.020408163
    %v1549 = vmul.f32 %v1423, 0.020408163
    %v1550 = vmul.f32 %v1426, 0.020408163
    %v1551 = vmul.f32 %v1429, 0.020408163
    %v1552 = vmul.f32 %v1432, 0.020408163
    %v1553 = vmul.f32 %v1435, 0.020408163
    %v1554 = vmul.f32 %v1438, 0.020408163
    %v1555 = vmul.f32 %v1441, 0.020408163
    %v1556 = vmul.f32 %v1444, 0.020408163
    %v1557 = vmul.f32 %v1447, 0.020408163
    %v1558 = vmul.f32 %v1450, 0.020408163
    %v1559 = vmul.f32 %v1453, 0.020408163
    %v1560 = vmul.f32 %v1456, 0.020408163
    %v1561 = vmul.f32 %v1459, 0.020408163
    %v1562 = vmul.f32 %v1462, 0.020408163
    %v1563 = vmul.f32 %v1463, %v1463
    %v1564 = vmul.f32 %v1464, %v1464
    %v1565 = vmul.f32 %v1465, %v1465
    %v1566 = vmul.f32 %v1466, %v1466
    %v1567 = vmul.f32 %v1467, %v1467
    %v1568 = vmul.f32 %v1468, %v1468
    %v1569 = vmul.f32 %v1469, %v1469
    %v1570 = vmul.f32 %v1470, %v1470
    %v1571 = vmul.f32 %v1471, %v1471
    %v1572 = vmul.f32 %v1472, %v1472
    %v1573 = vmul.f32 %v1473, %v1473
    %v1574 = vmul.f32 %v1474, %v1474
    %v1575 = vmul.f32 %v1475, %v1475
    %v1576 = vmul.f32 %v1476, %v1476
    %v1577 = vmul.f32 %v1477, %v1477
    %v1578 = vmul.f32 %v1478, %v1478
    %v1579 = vmul.f32 %v1479, %v1479
    %v1580 = vmul.f32 %v1480, %v1480
    %v1581 = vmul.f32 %v1481, %v1481
    %v1582 = vmul.f32 %v1482, %v1482
    %v1583 = vmul.f32 %v1483, %v1483
    %v1584 = vmul.f32 %v1484, %v1484
    %v1585 = vmul.f32 %v1485, %v1485
    %v1586 = vmul.f32 %v1486, %v1486
    %v1587 = vmul.f32 %v1487, %v1487
    %v1588 = vmul.f32 %v1488, %v1488
    %v1589 = vmul.f32 %v1489, %v1489
    %v1590 = vmul.f32 %v1490, %v1490
    %v1591 = vmul.f32 %v1491, %v1491
    %v1592 = vmul.f32 %v1492, %v1492
    %v1593 = vmul.f32 %v1493, %v1493
    %v1594 = vmul.f32 %v1494, %v1494
    %v1595 = vmul.f32 %v1495, %v1495
    %v1596 = vmul.f32 %v1496, %v1496
    %v1597 = vmul.f32 %v1497, %v1497
    %v1598 = vmul.f32 %v1498, %v1498
    %v1599 = vmul.f32 %v1499, %v1499
    %v1600 = vmul.f32 %v1500, %v1500
    %v1601 = vmul.f32 %v1501, %v1501
    %v1602 = vmul.f32 %v1502, %v1502
    %v1603 = vmul.f32 %v1503, %v1503
    %v1604 = vmul.f32 %v1504, %v1504
    %v1605 = vmul.f32 %v1505, %v1505
    %v1606 = vmul.f32 %v1506, %v1506
    %v1607 = vmul.f32 %v1507, %v1507
    %v1608 = vmul.f32 %v1508, %v1508
    %v1609 = vmul.f32 %v1509, %v1509
    %v1610 = vmul.f32 %v1510, %v1510
    %v1611 = vmul.f32 %v1511, %v1511
    %v1612 = vmul.f32 %v1512, %v1512
    %v1613 = vsub.f32 %v1513, %v1563
    %v1614 = vsub.f32 %v1514, %v1564
    %v1615 = vsub.f32 %v1515, %v1565
    %v1616 = vsub.f32 %v1516, %v1566
    %v1617 = vsub.f32 %v1517, %v1567
    %v1618 = vsub.f32 %v1518, %v1568
    %v1619 = vsub.f32 %v1519, %v1569
    %v1620 = vsub.f32 %v1520, %v1570
    %v1621 = vsub.f32 %v1521, %v1571
    %v1622 = vsub.f32 %v1522, %v1572
    %v1623 = vsub.f32 %v1523, %v1573
    %v1624 = vsub.f32 %v1524, %v1574
    %v1625 = vsub.f32 %v1525, %v1575
    %v1626 = vsub.f32 %v1526, %v1576
    %v1627 = vsub.f32 %v1527, %v1577
    %v1628 = vsub.f32 %v1528, %v1578
    %v1629 = vsub.f32 %v1529, %v1579
    %v1630 = vsub.f32 %v1530, %v1580
    %v1631 = vsub.f32 %v1531, %v1581
    %v1632 = vsub.f32 %v1532, %v1582
    %v1633 = vsub.f32 %v1533, %v1583
    %v1634 = vsub.f32 %v1534, %v1584
    %v1635 = vsub.f32 %v1535, %v1585
    %v1636 = vsub.f32 %v1536, %v1586
    %v1637 = vsub.f32 %v1537, %v1587
    %v1638 = vsub.f32 %v1538, %v1588
    %v1639 = vsub.f32 %v1539, %v1589
    %v1640 = vsub.f32 %v1540, %v1590
    %v1641 = vsub.f32 %v1541, %v1591
    %v1642 = vsub.f32 %v1542, %v1592
    %v1643 = vsub.f32 %v1543, %v1593
    %v1644 = vsub.f32 %v1544, %v1594
    %v1645 = vsub.f32 %v1545, %v1595
    %v1646 = vsub.f32 %v1546, %v1596
    %v1647 = vsub.f32 %v1547, %v1597
    %v1648 = vsub.f32 %v1548, %v1598
    %v1649 = vsub.f32 %v1549, %v1599
    %v1650 = vsub.f32 %v1550, %v1600
    %v1651 = vsub.f32 %v1551, %v1601
    %v1652 = vsub.f32 %v1552, %v1602
    %v1653 = vsub.f32 %v1553, %v1603
    %v1654 = vsub.f32 %v1554, %v1604
    %v1655 = vsub.f32 %v1555, %v1605
    %v1656 = vsub.f32 %v1556, %v1606
    %v1657 = vsub.f32 %v1557, %v1607
    %v1658 = vsub.f32 %v1558, %v1608
    %v1659 = vsub.f32 %v1559, %v1609
    %v1660 = vsub.f32 %v1560, %v1610
    %v1661 = vsub.f32 %v1561, %v1611
    %v1662 = vsub.f32 %v1562, %v1612
    %v1663 = vld [vmem:[%s2] sm:$0xff]
    %v1664 = vld [vmem:[%s2 + $0x8] sm:$0xff]
    %v1665 = vld [vmem:[%s2 + $0x10] sm:$0xff]
    %v1666 = vld [vmem:[%s2 + $0x18] sm:$0xff]
    %v1667 = vld [vmem:[%s2 + $0x20] sm:$0xff]
    %v1668 = vld [vmem:[%s2 + $0x28] sm:$0xff]
    %v1669 = vld [vmem:[%s2 + $0x30] sm:$0xff]
    %v1670 = vld [vmem:[%s2 + $0x38] sm:$0xff]
    %v1671 = vld [vmem:[%s2 + $0x40] sm:$0xff]
    %v1672 = vld [vmem:[%s2 + $0x48] sm:$0xff]
    %v1673 = vld [vmem:[%s2 + $0x50] sm:$0xff]
    %v1674 = vld [vmem:[%s2 + $0x58] sm:$0xff]
    %v1675 = vld [vmem:[%s2 + $0x60] sm:$0xff]
    %v1676 = vld [vmem:[%s2 + $0x68] sm:$0xff]
    %v1677 = vld [vmem:[%s2 + $0x70] sm:$0xff]
    %v1678 = vld [vmem:[%s2 + $0x78] sm:$0xff]
    %v1679 = vld [vmem:[%s2 + $0x80] sm:$0xff]
    %v1680 = vld [vmem:[%s2 + $0x88] sm:$0xff]
    %v1681 = vld [vmem:[%s2 + $0x90] sm:$0xff]
    %v1682 = vld [vmem:[%s2 + $0x98] sm:$0xff]
    %v1683 = vld [vmem:[%s2 + $0xa0] sm:$0xff]
    %v1684 = vld [vmem:[%s2 + $0xa8] sm:$0xff]
    %v1685 = vld [vmem:[%s2 + $0xb0] sm:$0xff]
    %v1686 = vld [vmem:[%s2 + $0xb8] sm:$0xff]
    %v1687 = vld [vmem:[%s2 + $0xc0] sm:$0xff]
    %v1688 = vld [vmem:[%s2 + $0xc8] sm:$0xff]
    %v1689 = vld [vmem:[%s2 + $0xd0] sm:$0xff]
    %v1690 = vld [vmem:[%s2 + $0xd8] sm:$0xff]
    %v1691 = vld [vmem:[%s2 + $0xe0] sm:$0xff]
    %v1692 = vld [vmem:[%s2 + $0xe8] sm:$0xff]
    %v1693 = vld [vmem:[%s2 + $0xf0] sm:$0xff]
    %v1694 = vld [vmem:[%s2 + $0xf8] sm:$0xff]
    %v1695 = vld [vmem:[%s2 + $0x100] sm:$0xff]
    %v1696 = vld [vmem:[%s2 + $0x108] sm:$0xff]
    %v1697 = vld [vmem:[%s2 + $0x110] sm:$0xff]
    %v1698 = vld [vmem:[%s2 + $0x118] sm:$0xff]
    %v1699 = vld [vmem:[%s2 + $0x120] sm:$0xff]
    %v1700 = vld [vmem:[%s2 + $0x128] sm:$0xff]
    %v1701 = vld [vmem:[%s2 + $0x130] sm:$0xff]
    %v1702 = vld [vmem:[%s2 + $0x138] sm:$0xff]
    %v1703 = vld [vmem:[%s2 + $0x140] sm:$0xff]
    %v1704 = vld [vmem:[%s2 + $0x148] sm:$0xff]
    %v1705 = vld [vmem:[%s2 + $0x150] sm:$0xff]
    %v1706 = vld [vmem:[%s2 + $0x158] sm:$0xff]
    %v1707 = vld [vmem:[%s2 + $0x160] sm:$0xff]
    %v1708 = vld [vmem:[%s2 + $0x168] sm:$0xff]
    %v1709 = vld [vmem:[%s2 + $0x170] sm:$0xff]
    %v1710 = vld [vmem:[%s2 + $0x178] sm:$0xff]
    %v1711 = vld [vmem:[%s2 + $0x180] sm:$0xff]
    %v1712 = vld [vmem:[%s2 + $0x188] sm:$0xff]
    %v1713 = vadd.f32 %v1613, 1e-05
    %v1714 = vadd.f32 %v1614, 1e-05
    %v1715 = vadd.f32 %v1615, 1e-05
    %v1716 = vadd.f32 %v1616, 1e-05
    %v1717 = vadd.f32 %v1617, 1e-05
    %v1718 = vadd.f32 %v1618, 1e-05
    %v1719 = vadd.f32 %v1619, 1e-05
    %v1720 = vadd.f32 %v1620, 1e-05
    %v1721 = vadd.f32 %v1621, 1e-05
    %v1722 = vadd.f32 %v1622, 1e-05
    %v1723 = vadd.f32 %v1623, 1e-05
    %v1724 = vadd.f32 %v1624, 1e-05
    %v1725 = vadd.f32 %v1625, 1e-05
    %v1726 = vadd.f32 %v1626, 1e-05
    %v1727 = vadd.f32 %v1627, 1e-05
    %v1728 = vadd.f32 %v1628, 1e-05
    %v1729 = vadd.f32 %v1629, 1e-05
    %v1730 = vadd.f32 %v1630, 1e-05
    %v1731 = vadd.f32 %v1631, 1e-05
    %v1732 = vadd.f32 %v1632, 1e-05
    %v1733 = vadd.f32 %v1633, 1e-05
    %v1734 = vadd.f32 %v1634, 1e-05
    %v1735 = vadd.f32 %v1635, 1e-05
    %v1736 = vadd.f32 %v1636, 1e-05
    %v1737 = vadd.f32 %v1637, 1e-05
    %v1738 = vadd.f32 %v1638, 1e-05
    %v1739 = vadd.f32 %v1639, 1e-05
    %v1740 = vadd.f32 %v1640, 1e-05
    %v1741 = vadd.f32 %v1641, 1e-05
    %v1742 = vadd.f32 %v1642, 1e-05
    %v1743 = vadd.f32 %v1643, 1e-05
    %v1744 = vadd.f32 %v1644, 1e-05
    %v1745 = vadd.f32 %v1645, 1e-05
    %v1746 = vadd.f32 %v1646, 1e-05
    %v1747 = vadd.f32 %v1647, 1e-05
    %v1748 = vadd.f32 %v1648, 1e-05
    %v1749 = vadd.f32 %v1649, 1e-05
    %v1750 = vadd.f32 %v1650, 1e-05
    %v1751 = vadd.f32 %v1651, 1e-05
    %v1752 = vadd.f32 %v1652, 1e-05
    %v1753 = vadd.f32 %v1653, 1e-05
    %v1754 = vadd.f32 %v1654, 1e-05
    %v1755 = vadd.f32 %v1655, 1e-05
    %v1756 = vadd.f32 %v1656, 1e-05
    %v1757 = vadd.f32 %v1657, 1e-05
    %v1758 = vadd.f32 %v1658, 1e-05
    %v1759 = vadd.f32 %v1659, 1e-05
    %v1760 = vadd.f32 %v1660, 1e-05
    %v1761 = vadd.f32 %v1661, 1e-05
    %v1762 = vadd.f32 %v1662, 1e-05
    %v1763 = vrsqrt.pop %v1713
    %v1764 = vrsqrt.pop %v1714
    %v1765 = vrsqrt.pop %v1715
    %v1766 = vrsqrt.pop %v1716
    %v1767 = vrsqrt.pop %v1717
    %v1768 = vrsqrt.pop %v1718
    %v1769 = vrsqrt.pop %v1719
    %v1770 = vrsqrt.pop %v1720
    %v1771 = vrsqrt.pop %v1721
    %v1772 = vrsqrt.pop %v1722
    %v1773 = vrsqrt.pop %v1723
    %v1774 = vrsqrt.pop %v1724
    %v1775 = vrsqrt.pop %v1725
    %v1776 = vrsqrt.pop %v1726
    %v1777 = vrsqrt.pop %v1727
    %v1778 = vrsqrt.pop %v1728
    %v1779 = vrsqrt.pop %v1729
    %v1780 = vrsqrt.pop %v1730
    %v1781 = vrsqrt.pop %v1731
    %v1782 = vrsqrt.pop %v1732
    %v1783 = vrsqrt.pop %v1733
    %v1784 = vrsqrt.pop %v1734
    %v1785 = vrsqrt.pop %v1735
    %v1786 = vrsqrt.pop %v1736
    %v1787 = vrsqrt.pop %v1737
    %v1788 = vrsqrt.pop %v1738
    %v1789 = vrsqrt.pop %v1739
    %v1790 = vrsqrt.pop %v1740
    %v1791 = vrsqrt.pop %v1741
    %v1792 = vrsqrt.pop %v1742
    %v1793 = vrsqrt.pop %v1743
    %v1794 = vrsqrt.pop %v1744
    %v1795 = vrsqrt.pop %v1745
    %v1796 = vrsqrt.pop %v1746
    %v1797 = vrsqrt.pop %v1747
    %v1798 = vrsqrt.pop %v1748
    %v1799 = vrsqrt.pop %v1749
    %v1800 = vrsqrt.pop %v1750
    %v1801 = vrsqrt.pop %v1751
    %v1802 = vrsqrt.pop %v1752
    %v1803 = vrsqrt.pop %v1753
    %v1804 = vrsqrt.pop %v1754
    %v1805 = vrsqrt.pop %v1755
    %v1806 = vrsqrt.pop %v1756
    %v1807 = vrsqrt.pop %v1757
    %v1808 = vrsqrt.pop %v1758
    %v1809 = vrsqrt.pop %v1759
    %v1810 = vrsqrt.pop %v1760
    %v1811 = vrsqrt.pop %v1761
    %v1812 = vrsqrt.pop %v1762
    %v1813 = vmul.f32 %v1663, %v1763
    %v1814 = vmul.f32 %v1664, %v1764
    %v1815 = vmul.f32 %v1665, %v1765
    %v1816 = vmul.f32 %v1666, %v1766
    %v1817 = vmul.f32 %v1667, %v1767
    %v1818 = vmul.f32 %v1668, %v1768
    %v1819 = vmul.f32 %v1669, %v1769
    %v1820 = vmul.f32 %v1670, %v1770
    %v1821 = vmul.f32 %v1671, %v1771
    %v1822 = vmul.f32 %v1672, %v1772
    %v1823 = vmul.f32 %v1673, %v1773
    %v1824 = vmul.f32 %v1674, %v1774
    %v1825 = vmul.f32 %v1675, %v1775
    %v1826 = vmul.f32 %v1676, %v1776
    %v1827 = vmul.f32 %v1677, %v1777
    %v1828 = vmul.f32 %v1678, %v1778
    %v1829 = vmul.f32 %v1679, %v1779
    %v1830 = vmul.f32 %v1680, %v1780
    %v1831 = vmul.f32 %v1681, %v1781
    %v1832 = vmul.f32 %v1682, %v1782
    %v1833 = vmul.f32 %v1683, %v1783
    %v1834 = vmul.f32 %v1684, %v1784
    %v1835 = vmul.f32 %v1685, %v1785
    %v1836 = vmul.f32 %v1686, %v1786
    %v1837 = vmul.f32 %v1687, %v1787
    %v1838 = vmul.f32 %v1688, %v1788
    %v1839 = vmul.f32 %v1689, %v1789
    %v1840 = vmul.f32 %v1690, %v1790
    %v1841 = vmul.f32 %v1691, %v1791
    %v1842 = vmul.f32 %v1692, %v1792
    %v1843 = vmul.f32 %v1693, %v1793
    %v1844 = vmul.f32 %v1694, %v1794
    %v1845 = vmul.f32 %v1695, %v1795
    %v1846 = vmul.f32 %v1696, %v1796
    %v1847 = vmul.f32 %v1697, %v1797
    %v1848 = vmul.f32 %v1698, %v1798
    %v1849 = vmul.f32 %v1699, %v1799
    %v1850 = vmul.f32 %v1700, %v1800
    %v1851 = vmul.f32 %v1701, %v1801
    %v1852 = vmul.f32 %v1702, %v1802
    %v1853 = vmul.f32 %v1703, %v1803
    %v1854 = vmul.f32 %v1704, %v1804
    %v1855 = vmul.f32 %v1705, %v1805
    %v1856 = vmul.f32 %v1706, %v1806
    %v1857 = vmul.f32 %v1707, %v1807
    %v1858 = vmul.f32 %v1708, %v1808
    %v1859 = vmul.f32 %v1709, %v1809
    %v1860 = vmul.f32 %v1710, %v1810
    %v1861 = vmul.f32 %v1711, %v1811
    %v1862 = vmul.f32 %v1712, %v1812
    %v1863 = vld [vmem:[%s3] sm:$0xff]
    %v1864 = vld [vmem:[%s3 + $0x8] sm:$0xff]
    %v1865 = vld [vmem:[%s3 + $0x10] sm:$0xff]
    %v1866 = vld [vmem:[%s3 + $0x18] sm:$0xff]
    %v1867 = vld [vmem:[%s3 + $0x20] sm:$0xff]
    %v1868 = vld [vmem:[%s3 + $0x28] sm:$0xff]
    %v1869 = vld [vmem:[%s3 + $0x30] sm:$0xff]
    %v1870 = vld [vmem:[%s3 + $0x38] sm:$0xff]
    %v1871 = vld [vmem:[%s3 + $0x40] sm:$0xff]
    %v1872 = vld [vmem:[%s3 + $0x48] sm:$0xff]
    %v1873 = vld [vmem:[%s3 + $0x50] sm:$0xff]
    %v1874 = vld [vmem:[%s3 + $0x58] sm:$0xff]
    %v1875 = vld [vmem:[%s3 + $0x60] sm:$0xff]
    %v1876 = vld [vmem:[%s3 + $0x68] sm:$0xff]
    %v1877 = vld [vmem:[%s3 + $0x70] sm:$0xff]
    %v1878 = vld [vmem:[%s3 + $0x78] sm:$0xff]
    %v1879 = vld [vmem:[%s3 + $0x80] sm:$0xff]
    %v1880 = vld [vmem:[%s3 + $0x88] sm:$0xff]
    %v1881 = vld [vmem:[%s3 + $0x90] sm:$0xff]
    %v1882 = vld [vmem:[%s3 + $0x98] sm:$0xff]
    %v1883 = vld [vmem:[%s3 + $0xa0] sm:$0xff]
    %v1884 = vld [vmem:[%s3 + $0xa8] sm:$0xff]
    %v1885 = vld [vmem:[%s3 + $0xb0] sm:$0xff]
    %v1886 = vld [vmem:[%s3 + $0xb8] sm:$0xff]
    %v1887 = vld [vmem:[%s3 + $0xc0] sm:$0xff]
    %v1888 = vld [vmem:[%s3 + $0xc8] sm:$0xff]
    %v1889 = vld [vmem:[%s3 + $0xd0] sm:$0xff]
    %v1890 = vld [vmem:[%s3 + $0xd8] sm:$0xff]
    %v1891 = vld [vmem:[%s3 + $0xe0] sm:$0xff]
    %v1892 = vld [vmem:[%s3 + $0xe8] sm:$0xff]
    %v1893 = vld [vmem:[%s3 + $0xf0] sm:$0xff]
    %v1894 = vld [vmem:[%s3 + $0xf8] sm:$0xff]
    %v1895 = vld [vmem:[%s3 + $0x100] sm:$0xff]
    %v1896 = vld [vmem:[%s3 + $0x108] sm:$0xff]
    %v1897 = vld [vmem:[%s3 + $0x110] sm:$0xff]
    %v1898 = vld [vmem:[%s3 + $0x118] sm:$0xff]
    %v1899 = vld [vmem:[%s3 + $0x120] sm:$0xff]
    %v1900 = vld [vmem:[%s3 + $0x128] sm:$0xff]
    %v1901 = vld [vmem:[%s3 + $0x130] sm:$0xff]
    %v1902 = vld [vmem:[%s3 + $0x138] sm:$0xff]
    %v1903 = vld [vmem:[%s3 + $0x140] sm:$0xff]
    %v1904 = vld [vmem:[%s3 + $0x148] sm:$0xff]
    %v1905 = vld [vmem:[%s3 + $0x150] sm:$0xff]
    %v1906 = vld [vmem:[%s3 + $0x158] sm:$0xff]
    %v1907 = vld [vmem:[%s3 + $0x160] sm:$0xff]
    %v1908 = vld [vmem:[%s3 + $0x168] sm:$0xff]
    %v1909 = vld [vmem:[%s3 + $0x170] sm:$0xff]
    %v1910 = vld [vmem:[%s3 + $0x178] sm:$0xff]
    %v1911 = vld [vmem:[%s3 + $0x180] sm:$0xff]
    %v1912 = vld [vmem:[%s3 + $0x188] sm:$0xff]
    %v1913 = vmul.f32 %v1463, %v1813
    %v1914 = vmul.f32 %v1464, %v1814
    %v1915 = vmul.f32 %v1465, %v1815
    %v1916 = vmul.f32 %v1466, %v1816
    %v1917 = vmul.f32 %v1467, %v1817
    %v1918 = vmul.f32 %v1468, %v1818
    %v1919 = vmul.f32 %v1469, %v1819
    %v1920 = vmul.f32 %v1470, %v1820
    %v1921 = vmul.f32 %v1471, %v1821
    %v1922 = vmul.f32 %v1472, %v1822
    %v1923 = vmul.f32 %v1473, %v1823
    %v1924 = vmul.f32 %v1474, %v1824
    %v1925 = vmul.f32 %v1475, %v1825
    %v1926 = vmul.f32 %v1476, %v1826
    %v1927 = vmul.f32 %v1477, %v1827
    %v1928 = vmul.f32 %v1478, %v1828
    %v1929 = vmul.f32 %v1479, %v1829
    %v1930 = vmul.f32 %v1480, %v1830
    %v1931 = vmul.f32 %v1481, %v1831
    %v1932 = vmul.f32 %v1482, %v1832
    %v1933 = vmul.f32 %v1483, %v1833
    %v1934 = vmul.f32 %v1484, %v1834
    %v1935 = vmul.f32 %v1485, %v1835
    %v1936 = vmul.f32 %v1486, %v1836
    %v1937 = vmul.f32 %v1487, %v1837
    %v1938 = vmul.f32 %v1488, %v1838
    %v1939 = vmul.f32 %v1489, %v1839
    %v1940 = vmul.f32 %v1490, %v1840
    %v1941 = vmul.f32 %v1491, %v1841
    %v1942 = vmul.f32 %v1492, %v1842
    %v1943 = vmul.f32 %v1493, %v1843
    %v1944 = vmul.f32 %v1494, %v1844
    %v1945 = vmul.f32 %v1495, %v1845
    %v1946 = vmul.f32 %v1496, %v1846
    %v1947 = vmul.f32 %v1497, %v1847
    %v1948 = vmul.f32 %v1498, %v1848
    %v1949 = vmul.f32 %v1499, %v1849
    %v1950 = vmul.f32 %v1500, %v1850
    %v1951 = vmul.f32 %v1501, %v1851
    %v1952 = vmul.f32 %v1502, %v1852
    %v1953 = vmul.f32 %v1503, %v1853
    %v1954 = vmul.f32 %v1504, %v1854
    %v1955 = vmul.f32 %v1505, %v1855
    %v1956 = vmul.f32 %v1506, %v1856
    %v1957 = vmul.f32 %v1507, %v1857
    %v1958 = vmul.f32 %v1508, %v1858
    %v1959 = vmul.f32 %v1509, %v1859
    %v1960 = vmul.f32 %v1510, %v1860
    %v1961 = vmul.f32 %v1511, %v1861
    %v1962 = vmul.f32 %v1512, %v1862
    %v1963 = vsub.f32 %v1863, %v1913
    %v1964 = vsub.f32 %v1864, %v1914
    %v1965 = vsub.f32 %v1865, %v1915
    %v1966 = vsub.f32 %v1866, %v1916
    %v1967 = vsub.f32 %v1867, %v1917
    %v1968 = vsub.f32 %v1868, %v1918
    %v1969 = vsub.f32 %v1869, %v1919
    %v1970 = vsub.f32 %v1870, %v1920
    %v1971 = vsub.f32 %v1871, %v1921
    %v1972 = vsub.f32 %v1872, %v1922
    %v1973 = vsub.f32 %v1873, %v1923
    %v1974 = vsub.f32 %v1874, %v1924
    %v1975 = vsub.f32 %v1875, %v1925
    %v1976 = vsub.f32 %v1876, %v1926
    %v1977 = vsub.f32 %v1877, %v1927
    %v1978 = vsub.f32 %v1878, %v1928
    %v1979 = vsub.f32 %v1879, %v1929
    %v1980 = vsub.f32 %v1880, %v1930
    %v1981 = vsub.f32 %v1881, %v1931
    %v1982 = vsub.f32 %v1882, %v1932
    %v1983 = vsub.f32 %v1883, %v1933
    %v1984 = vsub.f32 %v1884, %v1934
    %v1985 = vsub.f32 %v1885, %v1935
    %v1986 = vsub.f32 %v1886, %v1936
    %v1987 = vsub.f32 %v1887, %v1937
    %v1988 = vsub.f32 %v1888, %v1938
    %v1989 = vsub.f32 %v1889, %v1939
    %v1990 = vsub.f32 %v1890, %v1940
    %v1991 = vsub.f32 %v1891, %v1941
    %v1992 = vsub.f32 %v1892, %v1942
    %v1993 = vsub.f32 %v1893, %v1943
    %v1994 = vsub.f32 %v1894, %v1944
    %v1995 = vsub.f32 %v1895, %v1945
    %v1996 = vsub.f32 %v1896, %v1946
    %v1997 = vsub.f32 %v1897, %v1947
    %v1998 = vsub.f32 %v1898, %v1948
    %v1999 = vsub.f32 %v1899, %v1949
    %v2000 = vsub.f32 %v1900, %v1950
    %v2001 = vsub.f32 %v1901, %v1951
    %v2002 = vsub.f32 %v1902, %v1952
    %v2003 = vsub.f32 %v1903, %v1953
    %v2004 = vsub.f32 %v1904, %v1954
    %v2005 = vsub.f32 %v1905, %v1955
    %v2006 = vsub.f32 %v1906, %v1956
    %v2007 = vsub.f32 %v1907, %v1957
    %v2008 = vsub.f32 %v1908, %v1958
    %v2009 = vsub.f32 %v1909, %v1959
    %v2010 = vsub.f32 %v1910, %v1960
    %v2011 = vsub.f32 %v1911, %v1961
    %v2012 = vsub.f32 %v1912, %v1962
    %2014 = vset.pattern.permute.xlu0 0
    %2015 = vperm.xlu0 %2014, %v1813
    %v2016 = vpop.permute.xlu0 %2015
    %2019 = vset.pattern.permute.xlu0 0
    %2020 = vperm.xlu0 %2019, %v1814
    %v2021 = vpop.permute.xlu0 %2020
    %2024 = vset.pattern.permute.xlu0 0
    %2025 = vperm.xlu0 %2024, %v1815
    %v2026 = vpop.permute.xlu0 %2025
    %2029 = vset.pattern.permute.xlu0 0
    %2030 = vperm.xlu0 %2029, %v1816
    %v2031 = vpop.permute.xlu0 %2030
    %2034 = vset.pattern.permute.xlu0 0
    %2035 = vperm.xlu0 %2034, %v1817
    %v2036 = vpop.permute.xlu0 %2035
    %2039 = vset.pattern.permute.xlu0 0
    %2040 = vperm.xlu0 %2039, %v1818
    %v2041 = vpop.permute.xlu0 %2040
    %2044 = vset.pattern.permute.xlu0 0
    %2045 = vperm.xlu0 %2044, %v1819
    %v2046 = vpop.permute.xlu0 %2045
    %2049 = vset.pattern.permute.xlu0 0
    %2050 = vperm.xlu0 %2049, %v1820
    %v2051 = vpop.permute.xlu0 %2050
    %2054 = vset.pattern.permute.xlu0 0
    %2055 = vperm.xlu0 %2054, %v1821
    %v2056 = vpop.permute.xlu0 %2055
    %2059 = vset.pattern.permute.xlu0 0
    %2060 = vperm.xlu0 %2059, %v1822
    %v2061 = vpop.permute.xlu0 %2060
    %2064 = vset.pattern.permute.xlu0 0
    %2065 = vperm.xlu0 %2064, %v1823
    %v2066 = vpop.permute.xlu0 %2065
    %2069 = vset.pattern.permute.xlu0 0
    %2070 = vperm.xlu0 %2069, %v1824
    %v2071 = vpop.permute.xlu0 %2070
    %2074 = vset.pattern.permute.xlu0 0
    %2075 = vperm.xlu0 %2074, %v1825
    %v2076 = vpop.permute.xlu0 %2075
    %2079 = vset.pattern.permute.xlu0 0
    %2080 = vperm.xlu0 %2079, %v1826
    %v2081 = vpop.permute.xlu0 %2080
    %2084 = vset.pattern.permute.xlu0 0
    %2085 = vperm.xlu0 %2084, %v1827
    %v2086 = vpop.permute.xlu0 %2085
    %2089 = vset.pattern.permute.xlu0 0
    %2090 = vperm.xlu0 %2089, %v1828
    %v2091 = vpop.permute.xlu0 %2090
    %2094 = vset.pattern.permute.xlu0 0
    %2095 = vperm.xlu0 %2094, %v1829
    %v2096 = vpop.permute.xlu0 %2095
    %2099 = vset.pattern.permute.xlu0 0
    %2100 = vperm.xlu0 %2099, %v1830
    %v2101 = vpop.permute.xlu0 %2100
    %2104 = vset.pattern.permute.xlu0 0
    %2105 = vperm.xlu0 %2104, %v1831
    %v2106 = vpop.permute.xlu0 %2105
    %2109 = vset.pattern.permute.xlu0 0
    %2110 = vperm.xlu0 %2109, %v1832
    %v2111 = vpop.permute.xlu0 %2110
    %2114 = vset.pattern.permute.xlu0 0
    %2115 = vperm.xlu0 %2114, %v1833
    %v2116 = vpop.permute.xlu0 %2115
    %2119 = vset.pattern.permute.xlu0 0
    %2120 = vperm.xlu0 %2119, %v1834
    %v2121 = vpop.permute.xlu0 %2120
    %2124 = vset.pattern.permute.xlu0 0
    %2125 = vperm.xlu0 %2124, %v1835
    %v2126 = vpop.permute.xlu0 %2125
    %2129 = vset.pattern.permute.xlu0 0
    %2130 = vperm.xlu0 %2129, %v1836
    %v2131 = vpop.permute.xlu0 %2130
    %2134 = vset.pattern.permute.xlu0 0
    %2135 = vperm.xlu0 %2134, %v1837
    %v2136 = vpop.permute.xlu0 %2135
    %2139 = vset.pattern.permute.xlu0 0
    %2140 = vperm.xlu0 %2139, %v1838
    %v2141 = vpop.permute.xlu0 %2140
    %2144 = vset.pattern.permute.xlu0 0
    %2145 = vperm.xlu0 %2144, %v1839
    %v2146 = vpop.permute.xlu0 %2145
    %2149 = vset.pattern.permute.xlu0 0
    %2150 = vperm.xlu0 %2149, %v1840
    %v2151 = vpop.permute.xlu0 %2150
    %2154 = vset.pattern.permute.xlu0 0
    %2155 = vperm.xlu0 %2154, %v1841
    %v2156 = vpop.permute.xlu0 %2155
    %2159 = vset.pattern.permute.xlu0 0
    %2160 = vperm.xlu0 %2159, %v1842
    %v2161 = vpop.permute.xlu0 %2160
    %2164 = vset.pattern.permute.xlu0 0
    %2165 = vperm.xlu0 %2164, %v1843
    %v2166 = vpop.permute.xlu0 %2165
    %2169 = vset.pattern.permute.xlu0 0
    %2170 = vperm.xlu0 %2169, %v1844
    %v2171 = vpop.permute.xlu0 %2170
    %2174 = vset.pattern.permute.xlu0 0
    %2175 = vperm.xlu0 %2174, %v1845
    %v2176 = vpop.permute.xlu0 %2175
    %2179 = vset.pattern.permute.xlu0 0
    %2180 = vperm.xlu0 %2179, %v1846
    %v2181 = vpop.permute.xlu0 %2180
    %2184 = vset.pattern.permute.xlu0 0
    %2185 = vperm.xlu0 %2184, %v1847
    %v2186 = vpop.permute.xlu0 %2185
    %2189 = vset.pattern.permute.xlu0 0
    %2190 = vperm.xlu0 %2189, %v1848
    %v2191 = vpop.permute.xlu0 %2190
    %2194 = vset.pattern.permute.xlu0 0
    %2195 = vperm.xlu0 %2194, %v1849
    %v2196 = vpop.permute.xlu0 %2195
    %2199 = vset.pattern.permute.xlu0 0
    %2200 = vperm.xlu0 %2199, %v1850
    %v2201 = vpop.permute.xlu0 %2200
    %2204 = vset.pattern.permute.xlu0 0
    %2205 = vperm.xlu0 %2204, %v1851
    %v2206 = vpop.permute.xlu0 %2205
    %2209 = vset.pattern.permute.xlu0 0
    %2210 = vperm.xlu0 %2209, %v1852
    %v2211 = vpop.permute.xlu0 %2210
    %2214 = vset.pattern.permute.xlu0 0
    %2215 = vperm.xlu0 %2214, %v1853
    %v2216 = vpop.permute.xlu0 %2215
    %2219 = vset.pattern.permute.xlu0 0
    %2220 = vperm.xlu0 %2219, %v1854
    %v2221 = vpop.permute.xlu0 %2220
    %2224 = vset.pattern.permute.xlu0 0
    %2225 = vperm.xlu0 %2224, %v1855
    %v2226 = vpop.permute.xlu0 %2225
    %2229 = vset.pattern.permute.xlu0 0
    %2230 = vperm.xlu0 %2229, %v1856
    %v2231 = vpop.permute.xlu0 %2230
    %2234 = vset.pattern.permute.xlu0 0
    %2235 = vperm.xlu0 %2234, %v1857
    %v2236 = vpop.permute.xlu0 %2235
    %2239 = vset.pattern.permute.xlu0 0
    %2240 = vperm.xlu0 %2239, %v1858
    %v2241 = vpop.permute.xlu0 %2240
    %2244 = vset.pattern.permute.xlu0 0
    %2245 = vperm.xlu0 %2244, %v1859
    %v2246 = vpop.permute.xlu0 %2245
    %2249 = vset.pattern.permute.xlu0 0
    %2250 = vperm.xlu0 %2249, %v1860
    %v2251 = vpop.permute.xlu0 %2250
    %2254 = vset.pattern.permute.xlu0 0
    %2255 = vperm.xlu0 %2254, %v1861
    %v2256 = vpop.permute.xlu0 %2255
    %2259 = vset.pattern.permute.xlu0 0
    %2260 = vperm.xlu0 %2259, %v1862
    %v2261 = vpop.permute.xlu0 %2260
    %v2263 = vmul.f32 %v864, %v2016
    %v2264 = vmul.f32 %v869, %v2021
    %v2265 = vmul.f32 %v874, %v2026
    %v2266 = vmul.f32 %v879, %v2031
    %v2267 = vmul.f32 %v884, %v2036
    %v2268 = vmul.f32 %v889, %v2041
    %v2269 = vmul.f32 %v894, %v2046
    %v2270 = vmul.f32 %v899, %v2051
    %v2271 = vmul.f32 %v904, %v2056
    %v2272 = vmul.f32 %v909, %v2061
    %v2273 = vmul.f32 %v914, %v2066
    %v2274 = vmul.f32 %v919, %v2071
    %v2275 = vmul.f32 %v924, %v2076
    %v2276 = vmul.f32 %v929, %v2081
    %v2277 = vmul.f32 %v934, %v2086
    %v2278 = vmul.f32 %v939, %v2091
    %v2279 = vmul.f32 %v944, %v2096
    %v2280 = vmul.f32 %v949, %v2101
    %v2281 = vmul.f32 %v954, %v2106
    %v2282 = vmul.f32 %v959, %v2111
    %v2283 = vmul.f32 %v964, %v2116
    %v2284 = vmul.f32 %v969, %v2121
    %v2285 = vmul.f32 %v974, %v2126
    %v2286 = vmul.f32 %v979, %v2131
    %v2287 = vmul.f32 %v984, %v2136
    %v2288 = vmul.f32 %v989, %v2141
    %v2289 = vmul.f32 %v994, %v2146
    %v2290 = vmul.f32 %v999, %v2151
    %v2291 = vmul.f32 %v1004, %v2156
    %v2292 = vmul.f32 %v1009, %v2161
    %v2293 = vmul.f32 %v1014, %v2166
    %v2294 = vmul.f32 %v1019, %v2171
    %v2295 = vmul.f32 %v1024, %v2176
    %v2296 = vmul.f32 %v1029, %v2181
    %v2297 = vmul.f32 %v1034, %v2186
    %v2298 = vmul.f32 %v1039, %v2191
    %v2299 = vmul.f32 %v1044, %v2196
    %v2300 = vmul.f32 %v1049, %v2201
    %v2301 = vmul.f32 %v1054, %v2206
    %v2302 = vmul.f32 %v1059, %v2211
    %v2303 = vmul.f32 %v1064, %v2216
    %v2304 = vmul.f32 %v1069, %v2221
    %v2305 = vmul.f32 %v1074, %v2226
    %v2306 = vmul.f32 %v1079, %v2231
    %v2307 = vmul.f32 %v1084, %v2236
    %v2308 = vmul.f32 %v1089, %v2241
    %v2309 = vmul.f32 %v1094, %v2246
    %v2310 = vmul.f32 %v1099, %v2251
    %v2311 = vmul.f32 %v1104, %v2256
    %v2312 = vmul.f32 %v1109, %v2261
    %2314 = vset.pattern.permute.xlu0 0
    %2315 = vperm.xlu0 %2314, %v1963
    %v2316 = vpop.permute.xlu0 %2315
    %2319 = vset.pattern.permute.xlu0 0
    %2320 = vperm.xlu0 %2319, %v1964
    %v2321 = vpop.permute.xlu0 %2320
    %2324 = vset.pattern.permute.xlu0 0
    %2325 = vperm.xlu0 %2324, %v1965
    %v2326 = vpop.permute.xlu0 %2325
    %2329 = vset.pattern.permute.xlu0 0
    %2330 = vperm.xlu0 %2329, %v1966
    %v2331 = vpop.permute.xlu0 %2330
    %2334 = vset.pattern.permute.xlu0 0
    %2335 = vperm.xlu0 %2334, %v1967
    %v2336 = vpop.permute.xlu0 %2335
    %2339 = vset.pattern.permute.xlu0 0
    %2340 = vperm.xlu0 %2339, %v1968
    %v2341 = vpop.permute.xlu0 %2340
    %2344 = vset.pattern.permute.xlu0 0
    %2345 = vperm.xlu0 %2344, %v1969
    %v2346 = vpop.permute.xlu0 %2345
    %2349 = vset.pattern.permute.xlu0 0
    %2350 = vperm.xlu0 %2349, %v1970
    %v2351 = vpop.permute.xlu0 %2350
    %2354 = vset.pattern.permute.xlu0 0
    %2355 = vperm.xlu0 %2354, %v1971
    %v2356 = vpop.permute.xlu0 %2355
    %2359 = vset.pattern.permute.xlu0 0
    %2360 = vperm.xlu0 %2359, %v1972
    %v2361 = vpop.permute.xlu0 %2360
    %2364 = vset.pattern.permute.xlu0 0
    %2365 = vperm.xlu0 %2364, %v1973
    %v2366 = vpop.permute.xlu0 %2365
    %2369 = vset.pattern.permute.xlu0 0
    %2370 = vperm.xlu0 %2369, %v1974
    %v2371 = vpop.permute.xlu0 %2370
    %2374 = vset.pattern.permute.xlu0 0
    %2375 = vperm.xlu0 %2374, %v1975
    %v2376 = vpop.permute.xlu0 %2375
    %2379 = vset.pattern.permute.xlu0 0
    %2380 = vperm.xlu0 %2379, %v1976
    %v2381 = vpop.permute.xlu0 %2380
    %2384 = vset.pattern.permute.xlu0 0
    %2385 = vperm.xlu0 %2384, %v1977
    %v2386 = vpop.permute.xlu0 %2385
    %2389 = vset.pattern.permute.xlu0 0
    %2390 = vperm.xlu0 %2389, %v1978
    %v2391 = vpop.permute.xlu0 %2390
    %2394 = vset.pattern.permute.xlu0 0
    %2395 = vperm.xlu0 %2394, %v1979
    %v2396 = vpop.permute.xlu0 %2395
    %2399 = vset.pattern.permute.xlu0 0
    %2400 = vperm.xlu0 %2399, %v1980
    %v2401 = vpop.permute.xlu0 %2400
    %2404 = vset.pattern.permute.xlu0 0
    %2405 = vperm.xlu0 %2404, %v1981
    %v2406 = vpop.permute.xlu0 %2405
    %2409 = vset.pattern.permute.xlu0 0
    %2410 = vperm.xlu0 %2409, %v1982
    %v2411 = vpop.permute.xlu0 %2410
    %2414 = vset.pattern.permute.xlu0 0
    %2415 = vperm.xlu0 %2414, %v1983
    %v2416 = vpop.permute.xlu0 %2415
    %2419 = vset.pattern.permute.xlu0 0
    %2420 = vperm.xlu0 %2419, %v1984
    %v2421 = vpop.permute.xlu0 %2420
    %2424 = vset.pattern.permute.xlu0 0
    %2425 = vperm.xlu0 %2424, %v1985
    %v2426 = vpop.permute.xlu0 %2425
    %2429 = vset.pattern.permute.xlu0 0
    %2430 = vperm.xlu0 %2429, %v1986
    %v2431 = vpop.permute.xlu0 %2430
    %2434 = vset.pattern.permute.xlu0 0
    %2435 = vperm.xlu0 %2434, %v1987
    %v2436 = vpop.permute.xlu0 %2435
    %2439 = vset.pattern.permute.xlu0 0
    %2440 = vperm.xlu0 %2439, %v1988
    %v2441 = vpop.permute.xlu0 %2440
    %2444 = vset.pattern.permute.xlu0 0
    %2445 = vperm.xlu0 %2444, %v1989
    %v2446 = vpop.permute.xlu0 %2445
    %2449 = vset.pattern.permute.xlu0 0
    %2450 = vperm.xlu0 %2449, %v1990
    %v2451 = vpop.permute.xlu0 %2450
    %2454 = vset.pattern.permute.xlu0 0
    %2455 = vperm.xlu0 %2454, %v1991
    %v2456 = vpop.permute.xlu0 %2455
    %2459 = vset.pattern.permute.xlu0 0
    %2460 = vperm.xlu0 %2459, %v1992
    %v2461 = vpop.permute.xlu0 %2460
    %2464 = vset.pattern.permute.xlu0 0
    %2465 = vperm.xlu0 %2464, %v1993
    %v2466 = vpop.permute.xlu0 %2465
    %2469 = vset.pattern.permute.xlu0 0
    %2470 = vperm.xlu0 %2469, %v1994
    %v2471 = vpop.permute.xlu0 %2470
    %2474 = vset.pattern.permute.xlu0 0
    %2475 = vperm.xlu0 %2474, %v1995
    %v2476 = vpop.permute.xlu0 %2475
    %2479 = vset.pattern.permute.xlu0 0
    %2480 = vperm.xlu0 %2479, %v1996
    %v2481 = vpop.permute.xlu0 %2480
    %2484 = vset.pattern.permute.xlu0 0
    %2485 = vperm.xlu0 %2484, %v1997
    %v2486 = vpop.permute.xlu0 %2485
    %2489 = vset.pattern.permute.xlu0 0
    %2490 = vperm.xlu0 %2489, %v1998
    %v2491 = vpop.permute.xlu0 %2490
    %2494 = vset.pattern.permute.xlu0 0
    %2495 = vperm.xlu0 %2494, %v1999
    %v2496 = vpop.permute.xlu0 %2495
    %2499 = vset.pattern.permute.xlu0 0
    %2500 = vperm.xlu0 %2499, %v2000
    %v2501 = vpop.permute.xlu0 %2500
    %2504 = vset.pattern.permute.xlu0 0
    %2505 = vperm.xlu0 %2504, %v2001
    %v2506 = vpop.permute.xlu0 %2505
    %2509 = vset.pattern.permute.xlu0 0
    %2510 = vperm.xlu0 %2509, %v2002
    %v2511 = vpop.permute.xlu0 %2510
    %2514 = vset.pattern.permute.xlu0 0
    %2515 = vperm.xlu0 %2514, %v2003
    %v2516 = vpop.permute.xlu0 %2515
    %2519 = vset.pattern.permute.xlu0 0
    %2520 = vperm.xlu0 %2519, %v2004
    %v2521 = vpop.permute.xlu0 %2520
    %2524 = vset.pattern.permute.xlu0 0
    %2525 = vperm.xlu0 %2524, %v2005
    %v2526 = vpop.permute.xlu0 %2525
    %2529 = vset.pattern.permute.xlu0 0
    %2530 = vperm.xlu0 %2529, %v2006
    %v2531 = vpop.permute.xlu0 %2530
    %2534 = vset.pattern.permute.xlu0 0
    %2535 = vperm.xlu0 %2534, %v2007
    %v2536 = vpop.permute.xlu0 %2535
    %2539 = vset.pattern.permute.xlu0 0
    %2540 = vperm.xlu0 %2539, %v2008
    %v2541 = vpop.permute.xlu0 %2540
    %2544 = vset.pattern.permute.xlu0 0
    %2545 = vperm.xlu0 %2544, %v2009
    %v2546 = vpop.permute.xlu0 %2545
    %2549 = vset.pattern.permute.xlu0 0
    %2550 = vperm.xlu0 %2549, %v2010
    %v2551 = vpop.permute.xlu0 %2550
    %2554 = vset.pattern.permute.xlu0 0
    %2555 = vperm.xlu0 %2554, %v2011
    %v2556 = vpop.permute.xlu0 %2555
    %2559 = vset.pattern.permute.xlu0 0
    %2560 = vperm.xlu0 %2559, %v2012
    %v2561 = vpop.permute.xlu0 %2560
    %v2563 = vadd.f32 %v2263, %v2316
    %v2564 = vadd.f32 %v2264, %v2321
    %v2565 = vadd.f32 %v2265, %v2326
    %v2566 = vadd.f32 %v2266, %v2331
    %v2567 = vadd.f32 %v2267, %v2336
    %v2568 = vadd.f32 %v2268, %v2341
    %v2569 = vadd.f32 %v2269, %v2346
    %v2570 = vadd.f32 %v2270, %v2351
    %v2571 = vadd.f32 %v2271, %v2356
    %v2572 = vadd.f32 %v2272, %v2361
    %v2573 = vadd.f32 %v2273, %v2366
    %v2574 = vadd.f32 %v2274, %v2371
    %v2575 = vadd.f32 %v2275, %v2376
    %v2576 = vadd.f32 %v2276, %v2381
    %v2577 = vadd.f32 %v2277, %v2386
    %v2578 = vadd.f32 %v2278, %v2391
    %v2579 = vadd.f32 %v2279, %v2396
    %v2580 = vadd.f32 %v2280, %v2401
    %v2581 = vadd.f32 %v2281, %v2406
    %v2582 = vadd.f32 %v2282, %v2411
    %v2583 = vadd.f32 %v2283, %v2416
    %v2584 = vadd.f32 %v2284, %v2421
    %v2585 = vadd.f32 %v2285, %v2426
    %v2586 = vadd.f32 %v2286, %v2431
    %v2587 = vadd.f32 %v2287, %v2436
    %v2588 = vadd.f32 %v2288, %v2441
    %v2589 = vadd.f32 %v2289, %v2446
    %v2590 = vadd.f32 %v2290, %v2451
    %v2591 = vadd.f32 %v2291, %v2456
    %v2592 = vadd.f32 %v2292, %v2461
    %v2593 = vadd.f32 %v2293, %v2466
    %v2594 = vadd.f32 %v2294, %v2471
    %v2595 = vadd.f32 %v2295, %v2476
    %v2596 = vadd.f32 %v2296, %v2481
    %v2597 = vadd.f32 %v2297, %v2486
    %v2598 = vadd.f32 %v2298, %v2491
    %v2599 = vadd.f32 %v2299, %v2496
    %v2600 = vadd.f32 %v2300, %v2501
    %v2601 = vadd.f32 %v2301, %v2506
    %v2602 = vadd.f32 %v2302, %v2511
    %v2603 = vadd.f32 %v2303, %v2516
    %v2604 = vadd.f32 %v2304, %v2521
    %v2605 = vadd.f32 %v2305, %v2526
    %v2606 = vadd.f32 %v2306, %v2531
    %v2607 = vadd.f32 %v2307, %v2536
    %v2608 = vadd.f32 %v2308, %v2541
    %v2609 = vadd.f32 %v2309, %v2546
    %v2610 = vadd.f32 %v2310, %v2551
    %v2611 = vadd.f32 %v2311, %v2556
    %v2612 = vadd.f32 %v2312, %v2561
    %2613 = vst.msk [vmem:[%s4] sm:$0xff] %vm1112, %v2563
    %2614 = vst.msk [vmem:[%s4 + $0x8] sm:$0xff] %vm1112, %v2564
    %2615 = vst.msk [vmem:[%s4 + $0x10] sm:$0xff] %vm1112, %v2565
    %2616 = vst.msk [vmem:[%s4 + $0x18] sm:$0xff] %vm1112, %v2566
    %2617 = vst.msk [vmem:[%s4 + $0x20] sm:$0xff] %vm1112, %v2567
    %2618 = vst.msk [vmem:[%s4 + $0x28] sm:$0xff] %vm1112, %v2568
    %2619 = vst.msk [vmem:[%s4 + $0x30] sm:$0xff] %vm1112, %v2569
    %2620 = vst.msk [vmem:[%s4 + $0x38] sm:$0xff] %vm1112, %v2570
    %2621 = vst.msk [vmem:[%s4 + $0x40] sm:$0xff] %vm1112, %v2571
    %2622 = vst.msk [vmem:[%s4 + $0x48] sm:$0xff] %vm1112, %v2572
    %2623 = vst.msk [vmem:[%s4 + $0x50] sm:$0xff] %vm1112, %v2573
    %2624 = vst.msk [vmem:[%s4 + $0x58] sm:$0xff] %vm1112, %v2574
    %2625 = vst.msk [vmem:[%s4 + $0x60] sm:$0xff] %vm1112, %v2575
    %2626 = vst.msk [vmem:[%s4 + $0x68] sm:$0xff] %vm1112, %v2576
    %2627 = vst.msk [vmem:[%s4 + $0x70] sm:$0xff] %vm1112, %v2577
    %2628 = vst.msk [vmem:[%s4 + $0x78] sm:$0xff] %vm1112, %v2578
    %2629 = vst.msk [vmem:[%s4 + $0x80] sm:$0xff] %vm1112, %v2579
    %2630 = vst.msk [vmem:[%s4 + $0x88] sm:$0xff] %vm1112, %v2580
    %2631 = vst.msk [vmem:[%s4 + $0x90] sm:$0xff] %vm1112, %v2581
    %2632 = vst.msk [vmem:[%s4 + $0x98] sm:$0xff] %vm1112, %v2582
    %2633 = vst.msk [vmem:[%s4 + $0xa0] sm:$0xff] %vm1112, %v2583
    %2634 = vst.msk [vmem:[%s4 + $0xa8] sm:$0xff] %vm1112, %v2584
    %2635 = vst.msk [vmem:[%s4 + $0xb0] sm:$0xff] %vm1112, %v2585
    %2636 = vst.msk [vmem:[%s4 + $0xb8] sm:$0xff] %vm1112, %v2586
    %2637 = vst.msk [vmem:[%s4 + $0xc0] sm:$0xff] %vm1112, %v2587
    %2638 = vst.msk [vmem:[%s4 + $0xc8] sm:$0xff] %vm1112, %v2588
    %2639 = vst.msk [vmem:[%s4 + $0xd0] sm:$0xff] %vm1112, %v2589
    %2640 = vst.msk [vmem:[%s4 + $0xd8] sm:$0xff] %vm1112, %v2590
    %2641 = vst.msk [vmem:[%s4 + $0xe0] sm:$0xff] %vm1112, %v2591
    %2642 = vst.msk [vmem:[%s4 + $0xe8] sm:$0xff] %vm1112, %v2592
    %2643 = vst.msk [vmem:[%s4 + $0xf0] sm:$0xff] %vm1112, %v2593
    %2644 = vst.msk [vmem:[%s4 + $0xf8] sm:$0xff] %vm1112, %v2594
    %2645 = vst.msk [vmem:[%s4 + $0x100] sm:$0xff] %vm1112, %v2595
    %2646 = vst.msk [vmem:[%s4 + $0x108] sm:$0xff] %vm1112, %v2596
    %2647 = vst.msk [vmem:[%s4 + $0x110] sm:$0xff] %vm1112, %v2597
    %2648 = vst.msk [vmem:[%s4 + $0x118] sm:$0xff] %vm1112, %v2598
    %2649 = vst.msk [vmem:[%s4 + $0x120] sm:$0xff] %vm1112, %v2599
    %2650 = vst.msk [vmem:[%s4 + $0x128] sm:$0xff] %vm1112, %v2600
    %2651 = vst.msk [vmem:[%s4 + $0x130] sm:$0xff] %vm1112, %v2601
    %2652 = vst.msk [vmem:[%s4 + $0x138] sm:$0xff] %vm1112, %v2602
    %2653 = vst.msk [vmem:[%s4 + $0x140] sm:$0xff] %vm1112, %v2603
    %2654 = vst.msk [vmem:[%s4 + $0x148] sm:$0xff] %vm1112, %v2604
    %2655 = vst.msk [vmem:[%s4 + $0x150] sm:$0xff] %vm1112, %v2605
    %2656 = vst.msk [vmem:[%s4 + $0x158] sm:$0xff] %vm1112, %v2606
    %2657 = vst.msk [vmem:[%s4 + $0x160] sm:$0xff] %vm1112, %v2607
    %2658 = vst.msk [vmem:[%s4 + $0x168] sm:$0xff] %vm1112, %v2608
    %2659 = vst.msk [vmem:[%s4 + $0x170] sm:$0xff] %vm1112, %v2609
    %2660 = vst.msk [vmem:[%s4 + $0x178] sm:$0xff] %vm1112, %v2610
    %2661 = vst.msk [vmem:[%s4 + $0x180] sm:$0xff] %vm1112, %v2611
    %2662 = vst.msk [vmem:[%s4 + $0x188] sm:$0xff] %vm1112, %v2612
    // Predicated region
    $region22: #{tpu_custom_call.1} parent=1 // pred_check
      _
    $region23: #{tpu_custom_call.1} parent=1 // pred_check_branch
      %2664 = sbr.rel (0) target = $region25
    $region24: #{tpu_custom_call.1} parent=1 // pred_region
      _
    $region25: #{tpu_custom_call.1} parent=1 // pred_fallthru
      _
    // Predicated region
    $region26: #{tpu_custom_call.1} parent=1 // pred_check
      _
    $region27: #{tpu_custom_call.1} parent=1 // pred_check_branch
      %2666 = sbr.rel (0) target = $region29
    $region28: #{tpu_custom_call.1} parent=1 // pred_region
      _
    $region29: #{tpu_custom_call.1} parent=1 // pred_fallthru
      _
    %2667 = vsyncpa [#allocation3], 1

</llo_original>
